<compile_context>
chip_gen: v7x
topology: tpu7x:2x2x1
jax: 0.10.0
libtpu: 0.0.40
codegen_flags: <defaults>
</compile_context>

<pallas_src>
import jax
import jax.numpy as jnp
from jax.experimental import pallas as pl
from jax.experimental.pallas import tpu as pltpu


# ----------------------------------------------------------------------------
# Kernel
# ----------------------------------------------------------------------------
def linear_system_kernel(state0_ref, u_ref, nw_ref, nv_ref,
                         c_hbm, gu_hbm, gw_hbm, hblk_hbm, vblk_hbm,
                         states_ref, obs_ref,
                         carry_ref, c_v, gu_v, gw_v, hblk_v, vblk_v):
    """One (batch_block, time_chunk) grid step.

    state0_ref : (bb, S_D)        initial state for this batch block
    u_ref      : (bb, tt*I_D)     inputs chunk, lane-dense row layout
    nw_ref     : (bb, tt*S_D)     raw process-noise gaussians
    nv_ref     : (bb, tt*O_D)     raw observation-noise gaussians
    c_hbm      : (S_D, tt*S_D)    block t = (F^T)^(t+1)            (HBM, pl.ANY)
    gu_hbm     : (tt*I_D, tt*S_D) block (j,t) = B^T (F^T)^(t-j)     j<=t
    gw_hbm     : (tt*S_D, tt*S_D) block (j,t) = sqrt_S_W^T (F^T)^(t-j)
    hblk_hbm   : (tt*S_D, tt*O_D) blockdiag(H^T)
    vblk_hbm   : (tt*O_D, tt*O_D) blockdiag(sqrt_S_V^T)
    states_ref : (bb, tt*S_D)     output states slab
    obs_ref    : (bb, tt*O_D)     output observations slab
    carry_ref  : (bb, S_D) VMEM   running state across time chunks
    *_v        : VMEM scratch holding the staged constants (single-buffered)
    """
    f32 = jnp.float32
    s_d = carry_ref.shape[1]

    # First time-chunk of each batch block: stage the chunk-invariant
    # propagation matrices into single-buffered VMEM scratch (no pipeline
    # double-buffering for constants) and initialize the carried state.
    @pl.when(pl.program_id(1) == 0)
    def _init():
        pltpu.sync_copy(c_hbm, c_v)
        pltpu.sync_copy(gu_hbm, gu_v)
        pltpu.sync_copy(gw_hbm, gw_v)
        pltpu.sync_copy(hblk_hbm, hblk_v)
        pltpu.sync_copy(vblk_hbm, vblk_v)
        carry_ref[...] = state0_ref[...].astype(f32)

    # Whole-chunk state solve: one block-lower-triangular matmul replaces the
    # tt-step serial state @ F^T chain.  All operands/results are lane-dense.
    states_row = (
        jnp.dot(carry_ref[...], c_v[...], preferred_element_type=f32)
        + jnp.dot(u_ref[...], gu_v[...], preferred_element_type=f32)
        + jnp.dot(nw_ref[...], gw_v[...], preferred_element_type=f32))

    # Single lane-dense slab write for the whole chunk (no per-step vst.msk,
    # no readback of states_ref).
    states_ref[...] = states_row.astype(states_ref.dtype)

    # Carry = state at the last step of this chunk.
    last = states_row.shape[1] - s_d
    carry_ref[...] = states_row[:, last:]

    # Observation path, also a single slab: obs = states @ blockdiag(H^T) + V.
    obs_row = (
        jnp.dot(states_row.astype(hblk_v.dtype), hblk_v[...],
                preferred_element_type=f32)
        + jnp.dot(nv_ref[...], vblk_v[...], preferred_element_type=f32))
    obs_ref[...] = obs_row.astype(obs_ref.dtype)


# ----------------------------------------------------------------------------
# Wrapper helpers
# ----------------------------------------------------------------------------
def _tpu_info():
    """Best-effort (vmem_bytes, num_tensorcores); conservative fallbacks."""
    vmem_bytes, num_cores = 64 * 1024 * 1024, 1           # v7x-safe defaults
    try:
        info = pltpu.get_tpu_info()
        for attr in ("vmem_capacity_bytes", "vmem_bytes", "vmem_size_bytes"):
            v = getattr(info, attr, None)
            if v:
                vmem_bytes = int(v)
                break
        for attr in ("num_cores", "num_tensorcores", "tensorcore_count",
                     "core_count"):
            c = getattr(info, attr, None)
            if c:
                num_cores = int(c)
                break
    except Exception:
        pass
    return vmem_bytes, num_cores


def _select_batch_block(batch, num_cores):
    # Split the batch across TensorCores only on multi-TC chips (v7x).  On
    # single-TC chips the grid is a serial loop, so splitting only adds
    # per-step overhead and halves every matmul's M dimension.
    if num_cores >= 2 and batch % 2 == 0 and (batch // 2) % 8 == 0:
        return batch // 2
    return batch


def _vmem_block_bytes(tt, bb, s_d, i_d, o_d):
    """Rough f32 VMEM footprint for one choice of time tile."""
    f32 = 4
    streamed = 2 * bb * tt * (i_d + s_d + o_d) * f32          # double-buffered inputs
    outs = 2 * bb * tt * (s_d + o_d) * f32                    # double-buffered outputs
    consts = (s_d * tt * s_d + tt * i_d * tt * s_d + (tt * s_d) ** 2
              + tt * s_d * tt * o_d + (tt * o_d) ** 2) * f32  # single-buffered scratch
    carry_etc = 3 * bb * s_d * f32
    interm = 3 * bb * tt * (s_d + o_d) * f32                  # matmul temporaries
    return streamed + outs + consts + carry_etc + interm


def _select_t_tile(T, s_d, i_d, o_d, bb, budget_bytes, requested=None):
    """Largest divisor of T with lane-dense (mult-of-128) chunk slabs that fits
    the VMEM budget; whole-T blocks are always shape-legal as a fallback."""
    def lane_dense(tt):
        return ((tt * s_d) % 128 == 0 and (tt * i_d) % 128 == 0
                and (tt * o_d) % 128 == 0)

    cands = [tt for tt in range(1, T + 1)
             if T % tt == 0 and (tt == T or lane_dense(tt))]
    cands.sort(reverse=True)
    for tt in cands:
        if requested is not None and tt > requested:
            continue
        if _vmem_block_bytes(tt, bb, s_d, i_d, o_d) <= budget_bytes:
            return tt
    # Last resort: smallest legal tile (for huge S_D see TODO about the
    # log-depth scan formulation instead of the dense propagation matrix).
    return cands[-1]


def _chunk_propagation_matrices(F, B_mat, H, sqrt_S_W, sqrt_S_V, tt):
    """Precompute (in plain JAX, outside the kernel) the chunk-invariant
    propagation matrices built from powers of F^T."""
    f32 = jnp.float32
    s_d = F.shape[0]
    FT = jnp.asarray(F, f32).T

    powers = [jnp.eye(s_d, dtype=f32)]
    for _ in range(tt):
        powers.append(powers[-1] @ FT)
    P = jnp.stack(powers)                                  # (tt+1, S_D, S_D)

    # C[:, t] = (F^T)^(t+1): carries the incoming state into every chunk step.
    C = P[1:].transpose(1, 0, 2).reshape(s_d, tt * s_d)

    # G[j, t] = (F^T)^(t-j) for j <= t: block lower-triangular convolution.
    idx = jnp.arange(tt)[None, :] - jnp.arange(tt)[:, None]
    G = P[jnp.clip(idx, 0, tt)] * (idx >= 0)[:, :, None, None].astype(f32)
    G = G.transpose(0, 2, 1, 3).reshape(tt * s_d, tt * s_d)

    eye = jnp.eye(tt, dtype=f32)
    G_U = jnp.kron(eye, jnp.asarray(B_mat, f32).T) @ G     # (tt*I_D, tt*S_D)
    G_W = jnp.kron(eye, jnp.asarray(sqrt_S_W, f32).T) @ G  # (tt*S_D, tt*S_D)
    H_blk = jnp.kron(eye, jnp.asarray(H, f32).T)           # (tt*S_D, tt*O_D)
    V_blk = jnp.kron(eye, jnp.asarray(sqrt_S_V, f32).T)    # (tt*O_D, tt*O_D)
    return C, G_U, G_W, H_blk, V_blk


# ----------------------------------------------------------------------------
# Forward wrapper
# ----------------------------------------------------------------------------
def linear_system_forward(state, inputs, noise_w, noise_v,
                          F, B_mat, H, sqrt_S_W, sqrt_S_V,
                          *, t_tile=None, stream_dtype=jnp.float32):
    """Batch-first in/out.  `stream_dtype=jnp.bfloat16` halves HBM traffic for
    the streamed inputs/noise and the observation-path constants (recurrence
    propagation stays f32)."""
    Bsz, T, I_D = inputs.shape
    S_D = F.shape[0]
    O_D = H.shape[0]

    vmem_bytes, num_cores = _tpu_info()
    vmem_limit = min(int(vmem_bytes * 0.9), 112 * 1024 * 1024)

    bb = _select_batch_block(Bsz, num_cores)
    nb = Bsz // bb
    tt = _select_t_tile(T, S_D, I_D, O_D, bb, int(vmem_limit * 0.6),
                        requested=t_tile)
    nt = T // tt

    C, G_U, G_W, H_blk, V_blk = _chunk_propagation_matrices(
        F, B_mat, H, sqrt_S_W, sqrt_S_V, tt)
    H_blk = H_blk.astype(stream_dtype)
    V_blk = V_blk.astype(stream_dtype)

    # Free row-major reshapes (layout plumbing only — no transposes).
    state0 = jnp.asarray(state, jnp.float32)
    u_flat = jnp.asarray(inputs).reshape(Bsz, T * I_D).astype(stream_dtype)
    nw_flat = jnp.asarray(noise_w).reshape(Bsz, T * S_D).astype(stream_dtype)
    nv_flat = jnp.asarray(noise_v).reshape(Bsz, T * O_D).astype(stream_dtype)

    grid_spec = pltpu.PrefetchScalarGridSpec(
        num_scalar_prefetch=0,
        grid=(nb, nt),
        in_specs=[
            pl.BlockSpec((bb, S_D), lambda b, t: (b, 0)),            # state0
            pl.BlockSpec((bb, tt * I_D), lambda b, t: (b, t)),       # inputs
            pl.BlockSpec((bb, tt * S_D), lambda b, t: (b, t)),       # noise_w
            pl.BlockSpec((bb, tt * O_D), lambda b, t: (b, t)),       # noise_v
            pl.BlockSpec(memory_space=pl.ANY),                       # C
            pl.BlockSpec(memory_space=pl.ANY),                       # G_U
            pl.BlockSpec(memory_space=pl.ANY),                       # G_W
            pl.BlockSpec(memory_space=pl.ANY),                       # H_blk
            pl.BlockSpec(memory_space=pl.ANY),                       # V_blk
        ],
        out_specs=[
            pl.BlockSpec((bb, tt * S_D), lambda b, t: (b, t)),       # states
            pl.BlockSpec((bb, tt * O_D), lambda b, t: (b, t)),       # observations
        ],
        scratch_shapes=[
            pltpu.VMEM((bb, S_D), jnp.float32),                      # carry
            pltpu.VMEM((S_D, tt * S_D), jnp.float32),                # C
            pltpu.VMEM((tt * I_D, tt * S_D), jnp.float32),           # G_U
            pltpu.VMEM((tt * S_D, tt * S_D), jnp.float32),           # G_W
            pltpu.VMEM((tt * S_D, tt * O_D), H_blk.dtype),           # H_blk
            pltpu.VMEM((tt * O_D, tt * O_D), V_blk.dtype),           # V_blk
        ],
    )

    states_flat, obs_flat = pl.pallas_call(
        linear_system_kernel,
        out_shape=(jax.ShapeDtypeStruct((Bsz, T * S_D), jnp.float32),
                   jax.ShapeDtypeStruct((Bsz, T * O_D), jnp.float32)),
        grid_spec=grid_spec,
        compiler_params=pltpu.CompilerParams(
            dimension_semantics=("parallel", "arbitrary"),
            vmem_limit_bytes=vmem_limit),
    )(state0, u_flat, nw_flat, nv_flat, C, G_U, G_W, H_blk, V_blk)

    return {"state": states_flat.reshape(Bsz, T, S_D),
            "observation": obs_flat.reshape(Bsz, T, O_D)}


# ----------------------------------------------------------------------------
# Pure-JAX reference (mirrors the PyTorch loop)
# ----------------------------------------------------------------------------
def reference_forward(state, inputs, noise_w, noise_v,
                      F, B_mat, H, sqrt_S_W, sqrt_S_V):
    W = noise_w @ sqrt_S_W.T
    V = noise_v @ sqrt_S_V.T
    states, obs = [], []
    s = state
    for t in range(inputs.shape[1]):
        s = s @ F.T + inputs[:, t] @ B_mat.T + W[:, t]
        states.append(s)
        obs.append(s @ H.T + V[:, t])
    return {"state": jnp.stack(states, axis=1),
            "observation": jnp.stack(obs, axis=1)}


if __name__ == "__main__":
    # Small, deterministic setup (synthetic parameters; no checkpoint load).
    S_D, I_D, O_D = 8, 4, 4
    Bsz, T = 2, 64            # T=64, t_tile=32 -> two pipelined chunks (carry exercised)
    SNR = 10.0

    key = jax.random.PRNGKey(0)
    kF, kB, kH, kW, kV, kS, kU, kNW, kNV = jax.random.split(key, 9)

    # Deterministic "stable-ish" F (scaled-down spectral radius).
    F = 0.5 * jax.random.normal(kF, (S_D, S_D), jnp.float32) / jnp.sqrt(S_D)
    B_mat = jax.random.normal(kB, (S_D, I_D), jnp.float32)
    H = jax.random.normal(kH, (O_D, S_D), jnp.float32)
    sqrt_S_W = jax.random.normal(kW, (S_D, S_D), jnp.float32) / SNR
    sqrt_S_V = jax.random.normal(kV, (O_D, O_D), jnp.float32) / SNR
    # TODO(synk): K / S_observation_inf need a discrete Riccati (DARE) solve;
    # they are __init__-only and unused in forward, so they are omitted here.

    state0 = jax.random.normal(kS, (Bsz, S_D), jnp.float32)
    inputs = jax.random.normal(kU, (Bsz, T, I_D), jnp.float32)
    # The PyTorch forward draws torch.randn internally; here the SAME external
    # gaussians are fed to kernel and reference so results are comparable.
    # TODO(synk): on-chip noise via pltpu.prng_seed / prng_random_bits is
    # possible but would make kernel-vs-reference comparison impossible.
    noise_w = jax.random.normal(kNW, (Bsz, T, S_D), jnp.float32)
    noise_v = jax.random.normal(kNV, (Bsz, T, O_D), jnp.float32)

    out = linear_system_forward(state0, inputs, noise_w, noise_v,
                                F, B_mat, H, sqrt_S_W, sqrt_S_V, t_tile=32)
    jax.block_until_ready(out)

    ref = reference_forward(state0, inputs, noise_w, noise_v,
                            F, B_mat, H, sqrt_S_W, sqrt_S_V)

    assert out["state"].shape == (Bsz, T, S_D)
    assert out["observation"].shape == (Bsz, T, O_D)
    assert jnp.allclose(out["state"], ref["state"], atol=1e-4, rtol=1e-4)
    assert jnp.allclose(out["observation"], ref["observation"],
                        atol=1e-4, rtol=1e-4)

    print("KERNEL_OK")
</pallas_src>

<mosaic_0001>
module attributes {stable_mosaic.version = 11 : i64} {
  func.func @linear_system_kernel(%arg0: i32, %arg1: i32, %arg2: memref<2x8xf32, #tpu.memory_space<vmem>>, %arg3: memref<2x128xf32, #tpu.memory_space<vmem>>, %arg4: memref<2x256xf32, #tpu.memory_space<vmem>>, %arg5: memref<2x128xf32, #tpu.memory_space<vmem>>, %arg6: memref<8x256xf32, #tpu.memory_space<any>>, %arg7: memref<128x256xf32, #tpu.memory_space<any>>, %arg8: memref<256x256xf32, #tpu.memory_space<any>>, %arg9: memref<256x128xf32, #tpu.memory_space<any>>, %arg10: memref<128x128xf32, #tpu.memory_space<any>>, %arg11: memref<2x256xf32, #tpu.memory_space<vmem>>, %arg12: memref<2x128xf32, #tpu.memory_space<vmem>>, %arg13: memref<2x8xf32, #tpu.memory_space<vmem>>, %arg14: memref<8x256xf32, #tpu.memory_space<vmem>>, %arg15: memref<128x256xf32, #tpu.memory_space<vmem>>, %arg16: memref<256x256xf32, #tpu.memory_space<vmem>>, %arg17: memref<256x128xf32, #tpu.memory_space<vmem>>, %arg18: memref<128x128xf32, #tpu.memory_space<vmem>>) attributes {dimension_semantics = [#tpu.dimension_semantics<parallel>, #tpu.dimension_semantics<arbitrary>], iteration_bounds = array<i64: 1, 2>, scalar_prefetch = 0 : i64, scratch_operands = 6 : i64, tpu.core_type = #tpu.core_type<tc>, window_params = [{transform_indices = @transform_0, window_bounds = array<i64: 2, 8>}, {transform_indices = @transform_1, window_bounds = array<i64: 2, 128>}, {transform_indices = @transform_2, window_bounds = array<i64: 2, 256>}, {transform_indices = @transform_3, window_bounds = array<i64: 2, 128>}, {}, {}, {}, {}, {}, {transform_indices = @transform_9, window_bounds = array<i64: 2, 256>}, {transform_indices = @transform_10, window_bounds = array<i64: 2, 128>}]} {
    %c0_i32 = arith.constant 0 : i32
    %0 = arith.cmpi eq, %arg1, %c0_i32 : i32
    %1 = arith.extui %0 : i1 to i32
    %c0_i32_0 = arith.constant 0 : i32
    %2 = arith.cmpi ne, %1, %c0_i32_0 : i32
    scf.if %2 {
      "tpu.region"() ({
        %26 = tpu.sem_alloc : memref<!tpu.dma_semaphore, #tpu.memory_space<semaphore_mem>>
        tpu.enqueue_dma source(%arg6 : memref<8x256xf32, #tpu.memory_space<any>>) target(%arg14 : memref<8x256xf32, #tpu.memory_space<vmem>>) target_semaphore(%26 : memref<!tpu.dma_semaphore, #tpu.memory_space<semaphore_mem>>)
        tpu.wait_dma2 semaphore(%26 : memref<!tpu.dma_semaphore, #tpu.memory_space<semaphore_mem>>) src(%arg6 : memref<8x256xf32, #tpu.memory_space<any>>) dst(%arg14 : memref<8x256xf32, #tpu.memory_space<vmem>>)
        tpu.yield
      }) : () -> ()
      "tpu.region"() ({
        %26 = tpu.sem_alloc : memref<!tpu.dma_semaphore, #tpu.memory_space<semaphore_mem>>
        tpu.enqueue_dma source(%arg7 : memref<128x256xf32, #tpu.memory_space<any>>) target(%arg15 : memref<128x256xf32, #tpu.memory_space<vmem>>) target_semaphore(%26 : memref<!tpu.dma_semaphore, #tpu.memory_space<semaphore_mem>>)
        tpu.wait_dma2 semaphore(%26 : memref<!tpu.dma_semaphore, #tpu.memory_space<semaphore_mem>>) src(%arg7 : memref<128x256xf32, #tpu.memory_space<any>>) dst(%arg15 : memref<128x256xf32, #tpu.memory_space<vmem>>)
        tpu.yield
      }) : () -> ()
      "tpu.region"() ({
        %26 = tpu.sem_alloc : memref<!tpu.dma_semaphore, #tpu.memory_space<semaphore_mem>>
        tpu.enqueue_dma source(%arg8 : memref<256x256xf32, #tpu.memory_space<any>>) target(%arg16 : memref<256x256xf32, #tpu.memory_space<vmem>>) target_semaphore(%26 : memref<!tpu.dma_semaphore, #tpu.memory_space<semaphore_mem>>)
        tpu.wait_dma2 semaphore(%26 : memref<!tpu.dma_semaphore, #tpu.memory_space<semaphore_mem>>) src(%arg8 : memref<256x256xf32, #tpu.memory_space<any>>) dst(%arg16 : memref<256x256xf32, #tpu.memory_space<vmem>>)
        tpu.yield
      }) : () -> ()
      "tpu.region"() ({
        %26 = tpu.sem_alloc : memref<!tpu.dma_semaphore, #tpu.memory_space<semaphore_mem>>
        tpu.enqueue_dma source(%arg9 : memref<256x128xf32, #tpu.memory_space<any>>) target(%arg17 : memref<256x128xf32, #tpu.memory_space<vmem>>) target_semaphore(%26 : memref<!tpu.dma_semaphore, #tpu.memory_space<semaphore_mem>>)
        tpu.wait_dma2 semaphore(%26 : memref<!tpu.dma_semaphore, #tpu.memory_space<semaphore_mem>>) src(%arg9 : memref<256x128xf32, #tpu.memory_space<any>>) dst(%arg17 : memref<256x128xf32, #tpu.memory_space<vmem>>)
        tpu.yield
      }) : () -> ()
      "tpu.region"() ({
        %26 = tpu.sem_alloc : memref<!tpu.dma_semaphore, #tpu.memory_space<semaphore_mem>>
        tpu.enqueue_dma source(%arg10 : memref<128x128xf32, #tpu.memory_space<any>>) target(%arg18 : memref<128x128xf32, #tpu.memory_space<vmem>>) target_semaphore(%26 : memref<!tpu.dma_semaphore, #tpu.memory_space<semaphore_mem>>)
        tpu.wait_dma2 semaphore(%26 : memref<!tpu.dma_semaphore, #tpu.memory_space<semaphore_mem>>) src(%arg10 : memref<128x128xf32, #tpu.memory_space<any>>) dst(%arg18 : memref<128x128xf32, #tpu.memory_space<vmem>>)
        tpu.yield
      }) : () -> ()
      %c0_28 = arith.constant 0 : index
      %c0_29 = arith.constant 0 : index
      %24 = vector.load %arg2[%c0_28, %c0_29] : memref<2x8xf32, #tpu.memory_space<vmem>>, vector<2x8xf32>
      %c0_30 = arith.constant 0 : index
      %c0_31 = arith.constant 0 : index
      %25 = vector.load %arg13[%c0_30, %c0_31] : memref<2x8xf32, #tpu.memory_space<vmem>>, vector<2x8xf32>
      tpu.vector_store %arg13[%c0_30, %c0_31], %24 {strides = array<i32>} : memref<2x8xf32, #tpu.memory_space<vmem>>, vector<2x8xf32>,
    } else {
    }
    %c0 = arith.constant 0 : index
    %c0_1 = arith.constant 0 : index
    %3 = vector.load %arg13[%c0, %c0_1] : memref<2x8xf32, #tpu.memory_space<vmem>>, vector<2x8xf32>
    %c0_2 = arith.constant 0 : index
    %c0_3 = arith.constant 0 : index
    %4 = vector.load %arg14[%c0_2, %c0_3] : memref<8x256xf32, #tpu.memory_space<vmem>>, vector<8x256xf32>
    %cst = arith.constant dense<0.000000e+00> : vector<2x256xf32>
    %5 = tpu.matmul %3, %4, %cst {dimension_numbers = #tpu.dot_dimension_numbers<[1], [0], [0], [1], [0, 0, 1, 1], [], []>} : vector<2x8xf32>, vector<8x256xf32>, vector<2x256xf32> -> vector<2x256xf32>
    %c0_4 = arith.constant 0 : index
    %c0_5 = arith.constant 0 : index
    %6 = vector.load %arg3[%c0_4, %c0_5] : memref<2x128xf32, #tpu.memory_space<vmem>>, vector<2x128xf32>
    %c0_6 = arith.constant 0 : index
    %c0_7 = arith.constant 0 : index
    %7 = vector.load %arg15[%c0_6, %c0_7] : memref<128x256xf32, #tpu.memory_space<vmem>>, vector<128x256xf32>
    %cst_8 = arith.constant dense<0.000000e+00> : vector<2x256xf32>
    %8 = tpu.matmul %6, %7, %cst_8 {dimension_numbers = #tpu.dot_dimension_numbers<[1], [0], [0], [1], [0, 0, 1, 1], [], []>} : vector<2x128xf32>, vector<128x256xf32>, vector<2x256xf32> -> vector<2x256xf32>
    %9 = arith.addf %5, %8 : vector<2x256xf32>
    %c0_9 = arith.constant 0 : index
    %c0_10 = arith.constant 0 : index
    %10 = vector.load %arg4[%c0_9, %c0_10] : memref<2x256xf32, #tpu.memory_space<vmem>>, vector<2x256xf32>
    %c0_11 = arith.constant 0 : index
    %c0_12 = arith.constant 0 : index
    %11 = vector.load %arg16[%c0_11, %c0_12] : memref<256x256xf32, #tpu.memory_space<vmem>>, vector<256x256xf32>
    %cst_13 = arith.constant dense<0.000000e+00> : vector<2x256xf32>
    %12 = tpu.matmul %10, %11, %cst_13 {dimension_numbers = #tpu.dot_dimension_numbers<[1], [0], [0], [1], [0, 0, 1, 1], [], []>} : vector<2x256xf32>, vector<256x256xf32>, vector<2x256xf32> -> vector<2x256xf32>
    %13 = arith.addf %9, %12 : vector<2x256xf32>
    %c0_14 = arith.constant 0 : index
    %c0_15 = arith.constant 0 : index
    %14 = vector.load %arg11[%c0_14, %c0_15] : memref<2x256xf32, #tpu.memory_space<vmem>>, vector<2x256xf32>
    tpu.vector_store %arg11[%c0_14, %c0_15], %13 {strides = array<i32>} : memref<2x256xf32, #tpu.memory_space<vmem>>, vector<2x256xf32>,
    %15 = vector.extract_strided_slice %13 {offsets = [0, 248], sizes = [2, 8], strides = [1, 1]} : vector<2x256xf32> to vector<2x8xf32>
    %c0_16 = arith.constant 0 : index
    %c0_17 = arith.constant 0 : index
    %16 = vector.load %arg13[%c0_16, %c0_17] : memref<2x8xf32, #tpu.memory_space<vmem>>, vector<2x8xf32>
    tpu.vector_store %arg13[%c0_16, %c0_17], %15 {strides = array<i32>} : memref<2x8xf32, #tpu.memory_space<vmem>>, vector<2x8xf32>,
    %c0_18 = arith.constant 0 : index
    %c0_19 = arith.constant 0 : index
    %17 = vector.load %arg17[%c0_18, %c0_19] : memref<256x128xf32, #tpu.memory_space<vmem>>, vector<256x128xf32>
    %cst_20 = arith.constant dense<0.000000e+00> : vector<2x128xf32>
    %18 = tpu.matmul %13, %17, %cst_20 {dimension_numbers = #tpu.dot_dimension_numbers<[1], [0], [0], [1], [0, 0, 1, 1], [], []>} : vector<2x256xf32>, vector<256x128xf32>, vector<2x128xf32> -> vector<2x128xf32>
    %c0_21 = arith.constant 0 : index
    %c0_22 = arith.constant 0 : index
    %19 = vector.load %arg5[%c0_21, %c0_22] : memref<2x128xf32, #tpu.memory_space<vmem>>, vector<2x128xf32>
    %c0_23 = arith.constant 0 : index
    %c0_24 = arith.constant 0 : index
    %20 = vector.load %arg18[%c0_23, %c0_24] : memref<128x128xf32, #tpu.memory_space<vmem>>, vector<128x128xf32>
    %cst_25 = arith.constant dense<0.000000e+00> : vector<2x128xf32>
    %21 = tpu.matmul %19, %20, %cst_25 {dimension_numbers = #tpu.dot_dimension_numbers<[1], [0], [0], [1], [0, 0, 1, 1], [], []>} : vector<2x128xf32>, vector<128x128xf32>, vector<2x128xf32> -> vector<2x128xf32>
    %22 = arith.addf %18, %21 : vector<2x128xf32>
    %c0_26 = arith.constant 0 : index
    %c0_27 = arith.constant 0 : index
    %23 = vector.load %arg12[%c0_26, %c0_27] : memref<2x128xf32, #tpu.memory_space<vmem>>, vector<2x128xf32>
    tpu.vector_store %arg12[%c0_26, %c0_27], %22 {strides = array<i32>} : memref<2x128xf32, #tpu.memory_space<vmem>>, vector<2x128xf32>,
    return
  }
  func.func @transform_0(%arg0: i32, %arg1: i32) -> (i32, i32) {
    %c0_i32 = arith.constant 0 : i32
    %c0_i32_0 = arith.constant 0 : i32
    return %arg0, %c0_i32 : i32, i32
  }
  func.func @transform_1(%arg0: i32, %arg1: i32) -> (i32, i32) {
    %c0_i32 = arith.constant 0 : i32
    return %arg0, %arg1 : i32, i32
  }
  func.func @transform_2(%arg0: i32, %arg1: i32) -> (i32, i32) {
    %c0_i32 = arith.constant 0 : i32
    return %arg0, %arg1 : i32, i32
  }
  func.func @transform_3(%arg0: i32, %arg1: i32) -> (i32, i32) {
    %c0_i32 = arith.constant 0 : i32
    return %arg0, %arg1 : i32, i32
  }
  func.func @transform_9(%arg0: i32, %arg1: i32) -> (i32, i32) {
    %c0_i32 = arith.constant 0 : i32
    return %arg0, %arg1 : i32, i32
  }
  func.func @transform_10(%arg0: i32, %arg1: i32) -> (i32, i32) {
    %c0_i32 = arith.constant 0 : i32
    return %arg0, %arg1 : i32, i32
  }
}

</mosaic_0001>

<llo_original>
// kernel: tpu_custom_call.1
$region0: #{tpu_custom_call.1}
  #allocation0 [shape = 'u32[]', space=smem, size = 0x4, offset = 0x4, fixed_abs, tag = 'smem constant byte address 0x4 - core index']
  #allocation1 [shape = 'u32[144,128]{1,0:T(1,128)}', space=vmem, size = 0x12000, scoped, tag = 'internal scratch']
  #allocation2 [shape = 'f32[2,8]{1,0:T(2,128)}', space=vmem, size = 0x400, scoped, tag = 'scratch operand']
  #allocation3 [shape = 'f32[8,256]{1,0:T(8,128)}', space=vmem, size = 0x2000, scoped, tag = 'scratch operand']
  #allocation4 [shape = 'f32[128,256]{1,0:T(8,128)}', space=vmem, size = 0x20000, scoped, tag = 'scratch operand']
  #allocation5 [shape = 'f32[256,256]{1,0:T(8,128)}', space=vmem, size = 0x40000, scoped, tag = 'scratch operand']
  #allocation6 [shape = 'f32[256,128]{1,0:T(8,128)}', space=vmem, size = 0x20000, scoped, tag = 'scratch operand']
  #allocation7 [shape = 'f32[128,128]{1,0:T(8,128)}', space=vmem, size = 0x10000, scoped, tag = 'scratch operand']
  #allocation18 [shape = 's32[]', space=sflag, size = 0x4, offset = 0, fixed_abs, tag = 'sflag constant byte address 0x0 - dummy sync flag']
  #allocation19 [shape = 's32[]', space=sflag, size = 0x4, offset = 0, fixed_abs, tag = 'sflag constant byte address 0x0 - dummy sync flag']
  #allocation20 [shape = 'u32[]', space=smem, size = 0x4, offset = 0x44, fixed_abs, tag = 'smem constant byte address 0x44 - assertion arg 0']
  #allocation21 [shape = 'u32[]', space=smem, size = 0x4, offset = 0x48, fixed_abs, tag = 'smem constant byte address 0x48 - assertion arg 1']
  #allocation23 [shape = 's32[]', space=sflag, size = 0x4, offset = 0, fixed_abs, tag = 'sflag constant byte address 0x0 - dummy sync flag']
  #allocation24 [shape = 's32[]', space=sflag, size = 0x4, offset = 0, fixed_abs, tag = 'sflag constant byte address 0x0 - dummy sync flag']
  #allocation26 [shape = 's32[]', space=sflag, size = 0x4, offset = 0, fixed_abs, tag = 'sflag constant byte address 0x0 - dummy sync flag']
  #allocation27 [shape = 's32[]', space=sflag, size = 0x4, offset = 0, fixed_abs, tag = 'sflag constant byte address 0x0 - dummy sync flag']
  #allocation29 [shape = 's32[]', space=sflag, size = 0x4, offset = 0, fixed_abs, tag = 'sflag constant byte address 0x0 - dummy sync flag']
  #allocation30 [shape = 's32[]', space=sflag, size = 0x4, offset = 0, fixed_abs, tag = 'sflag constant byte address 0x0 - dummy sync flag']
  #allocation32 [shape = 's32[]', space=sflag, size = 0x4, offset = 0, fixed_abs, tag = 'sflag constant byte address 0x0 - dummy sync flag']
  #allocation33 [shape = 's32[]', space=sflag, size = 0x4, offset = 0, fixed_abs, tag = 'sflag constant byte address 0x0 - dummy sync flag']
  %s0 = inlined_call_operand.hbm [shape: f32[2,8], index: 0, kind: input, shape index: {}]
  %s1 = inlined_call_operand.hbm [shape: f32[2,256], index: 1, kind: input, shape index: {}]
  %s2 = inlined_call_operand.hbm [shape: f32[2,512], index: 2, kind: input, shape index: {}]
  %s3 = inlined_call_operand.vmem [shape: f32[2,256], index: 3, kind: input, shape index: {}]
  %s4 = inlined_call_operand.hbm [shape: f32[8,256], index: 4, kind: input, shape index: {}]
  %s5 = inlined_call_operand.hbm [shape: f32[128,256], index: 5, kind: input, shape index: {}]
  %s6 = inlined_call_operand.hbm [shape: f32[256,256], index: 6, kind: input, shape index: {}]
  %s7 = inlined_call_operand.hbm [shape: f32[256,128], index: 7, kind: input, shape index: {}]
  %s8 = inlined_call_operand.hbm [shape: f32[128,128], index: 8, kind: input, shape index: {}]
  %s9 = inlined_call_operand.hbm [shape: f32[2,512], index: 9, kind: output, shape index: {0}]
  %s10 = inlined_call_operand.hbm [shape: f32[2,256], index: 10, kind: output, shape index: {1}]
  %11 = xla_tuple %s9, %s10
  %s12 = sld [smem:[#allocation0]]
  $region98: #{tpu_custom_call.1} parent=0
    _
  %s14 = ssub.s32 1, %s12
  %s15 = scalar_select 0, %s14, %s12
  $region1: #{tpu_custom_call.1} parent=0
    #allocation8 [shape = 'u8[1024]{0}', space=vmem, size = 0x400, scoped, tag = 'input window, operand 0, single buffered']
    #allocation9 [shape = 's32[2]{0}', space=sflag, size = 0x8, scoped, tag = 'scoped memory for tpu_custom_call.1']
    #allocation10 [shape = 's32[2]{0}', space=sflag, size = 0x8, scoped, tag = 'scoped memory for tpu_custom_call.1']
    #allocation11 [shape = 'u8[2048]{0}', space=vmem, size = 0x800, scoped, tag = 'input window, operand 1']
    #allocation12 [shape = 's32[2]{0}', space=sflag, size = 0x8, scoped, tag = 'scoped memory for tpu_custom_call.1']
    #allocation13 [shape = 'u8[4096]{0}', space=vmem, size = 0x1000, scoped, tag = 'input window, operand 2']
    #allocation14 [shape = 'u8[4096]{0}', space=vmem, size = 0x1000, scoped, tag = 'output window, operand 0']
    #allocation15 [shape = 'u8[2048]{0}', space=vmem, size = 0x800, scoped, tag = 'output window, operand 1']
    #allocation16 [shape = 's32[2]{0}', space=sflag, size = 0x8, scoped, tag = 'scoped memory for tpu_custom_call.1']
    %16 = vsyncpa [#allocation9], 0
    %17 = vsyncpa [#allocation12], 0
    %s18 = scalar_lea.sflag [#allocation12], 1
    %19 = vsyncpa %s18, 0
    %20 = vsyncpa [#allocation10], 0
    %s21 = scalar_lea.sflag [#allocation10], 1
    %22 = vsyncpa %s21, 0
    %23 = vsyncpa [#allocation16], 0
    %s24 = scalar_lea.sflag [#allocation16], 1
    %25 = vsyncpa %s24, 0
    loop: start=0, step=1, limit=4
    $region2: #{tpu_custom_call.1} parent=1 // loop_pre_header
      _
    $region3: #{tpu_custom_call.1} parent=1 // loop_header
      %s27 = sphi 0, %s31
      %p28 = scmp.ge.s32.totalorder %s27, 4
      %s34 = sphi 0, %s46
      %s35 = sphi 0, %s42
      %s36 = sphi 0, %s34
      %s37 = sphi 0, %s35
      %s38 = sphi 0, %s36
      %s39 = sphi 0, %s37
      %s49 = sphi 0, %s51
      %s52 = sphi 0, %s49
      %s53 = sphi 0, %s52
      %s69 = sphi 0, %s53
      %s77 = sphi 0, %s79
      %s80 = sphi 0, %s77
      %s81 = sphi 0, %s80
      %s97 = sphi 0, %s81
      %s105 = sphi 0, %s107
      %s108 = sphi 0, %s105
      %s109 = sphi 0, %s108
      %s125 = sphi 0, %s109
      %s133 = sphi 0, %s135
      %s136 = sphi 0, %s133
      %s137 = sphi 0, %s136
      %s153 = sphi 0, %s137
      %s161 = sphi 0, %s163
      %s164 = sphi 0, %s161
      %s165 = sphi 0, %s164
      %s181 = sphi 0, %s165
      %s189 = sphi 0, %s191
      %s192 = sphi 0, %s189
      %s193 = sphi 0, %s192
      %s209 = sphi 0, %s193
    $region4: #{tpu_custom_call.1} parent=1 // loop_header_branch
      %30 = sbr.rel (%p28) target = $region8
    $region5: #{tpu_custom_call.1} parent=1 // loop_body
      %s32 = ssub.s32 %s27, 1
      %s33 = ssub.s32 %s27, 2
      %s40 = sadd.s32 1, %s35
      %p41 = scmp.ge.s32.totalorder %s40, 2
      %s42 = scalar_select %p41, 0, %s40
      %s43 = sadd.s32 1, %s34
      %s44 = scalar_select %p41, %s43, %s34
      %p45 = scmp.ge.s32.totalorder %s44, 1
      %s46 = scalar_select %p45, 0, %s44
      %s47 = ssub.s32 %s34, %s46
      %p48 = scmp.eq.s32.totalorder %s47, 0
      %s50 = sadd.s32 %s49, 1
      %s51 = scalar_select %p48, %s49, %s50
      %p54 = pneg %p48
      %p55 = scmp.eq.s32.totalorder %s27, 1
      %p56 = por %p54, %p55
      %p57 = scmp.ne.s32.totalorder %s49, %s52
      %p58 = scmp.eq.s32.totalorder %s27, 0
      %p59 = por %p57, %p58
      %p60 = scmp.ne.s32.totalorder %s49, %s52
      %p61 = scmp.eq.s32.totalorder %s32, 1
      %p62 = por %p60, %p61
      %p63 = scmp.ne.s32.totalorder %s52, %s53
      %p64 = scmp.eq.s32.totalorder %s32, 0
      %p65 = por %p63, %p64
      %p66 = scmp.ne.s32.totalorder %s52, %s53
      %p67 = scmp.eq.s32.totalorder %s33, 1
      %p68 = por %p66, %p67
      %p70 = scmp.ne.s32.totalorder %s53, %s69
      %p71 = scmp.eq.s32.totalorder %s33, 0
      %p72 = por %p70, %p71
      %s73 = ssub.s32 %s34, %s46
      %s74 = ssub.s32 %s35, %s42
      %s75 = sor.u32 %s73, %s74
      %p76 = scmp.eq.s32.totalorder %s75, 0
      %s78 = sadd.s32 %s77, 1
      %s79 = scalar_select %p76, %s77, %s78
      %p82 = pneg %p76
      %p83 = scmp.eq.s32.totalorder %s27, 1
      %p84 = por %p82, %p83
      %p85 = scmp.ne.s32.totalorder %s77, %s80
      %p86 = scmp.eq.s32.totalorder %s27, 0
      %p87 = por %p85, %p86
      %p88 = scmp.ne.s32.totalorder %s77, %s80
      %p89 = scmp.eq.s32.totalorder %s32, 1
      %p90 = por %p88, %p89
      %p91 = scmp.ne.s32.totalorder %s80, %s81
      %p92 = scmp.eq.s32.totalorder %s32, 0
      %p93 = por %p91, %p92
      %p94 = scmp.ne.s32.totalorder %s80, %s81
      %p95 = scmp.eq.s32.totalorder %s33, 1
      %p96 = por %p94, %p95
      %p98 = scmp.ne.s32.totalorder %s81, %s97
      %p99 = scmp.eq.s32.totalorder %s33, 0
      %p100 = por %p98, %p99
      %s101 = ssub.s32 %s34, %s46
      %s102 = ssub.s32 %s35, %s42
      %s103 = sor.u32 %s101, %s102
      %p104 = scmp.eq.s32.totalorder %s103, 0
      %s106 = sadd.s32 %s105, 1
      %s107 = scalar_select %p104, %s105, %s106
      %p110 = pneg %p104
      %p111 = scmp.eq.s32.totalorder %s27, 1
      %p112 = por %p110, %p111
      %p113 = scmp.ne.s32.totalorder %s105, %s108
      %p114 = scmp.eq.s32.totalorder %s27, 0
      %p115 = por %p113, %p114
      %p116 = scmp.ne.s32.totalorder %s105, %s108
      %p117 = scmp.eq.s32.totalorder %s32, 1
      %p118 = por %p116, %p117
      %p119 = scmp.ne.s32.totalorder %s108, %s109
      %p120 = scmp.eq.s32.totalorder %s32, 0
      %p121 = por %p119, %p120
      %p122 = scmp.ne.s32.totalorder %s108, %s109
      %p123 = scmp.eq.s32.totalorder %s33, 1
      %p124 = por %p122, %p123
      %p126 = scmp.ne.s32.totalorder %s109, %s125
      %p127 = scmp.eq.s32.totalorder %s33, 0
      %p128 = por %p126, %p127
      %s129 = ssub.s32 %s34, %s46
      %s130 = ssub.s32 %s35, %s42
      %s131 = sor.u32 %s129, %s130
      %p132 = scmp.eq.s32.totalorder %s131, 0
      %s134 = sadd.s32 %s133, 1
      %s135 = scalar_select %p132, %s133, %s134
      %p138 = pneg %p132
      %p139 = scmp.eq.s32.totalorder %s27, 1
      %p140 = por %p138, %p139
      %p141 = scmp.ne.s32.totalorder %s133, %s136
      %p142 = scmp.eq.s32.totalorder %s27, 0
      %p143 = por %p141, %p142
      %p144 = scmp.ne.s32.totalorder %s133, %s136
      %p145 = scmp.eq.s32.totalorder %s32, 1
      %p146 = por %p144, %p145
      %p147 = scmp.ne.s32.totalorder %s136, %s137
      %p148 = scmp.eq.s32.totalorder %s32, 0
      %p149 = por %p147, %p148
      %p150 = scmp.ne.s32.totalorder %s136, %s137
      %p151 = scmp.eq.s32.totalorder %s33, 1
      %p152 = por %p150, %p151
      %p154 = scmp.ne.s32.totalorder %s137, %s153
      %p155 = scmp.eq.s32.totalorder %s33, 0
      %p156 = por %p154, %p155
      %s157 = ssub.s32 %s34, %s46
      %s158 = ssub.s32 %s35, %s42
      %s159 = sor.u32 %s157, %s158
      %p160 = scmp.eq.s32.totalorder %s159, 0
      %s162 = sadd.s32 %s161, 1
      %s163 = scalar_select %p160, %s161, %s162
      %p166 = pneg %p160
      %p167 = scmp.eq.s32.totalorder %s27, 1
      %p168 = por %p166, %p167
      %p169 = scmp.ne.s32.totalorder %s161, %s164
      %p170 = scmp.eq.s32.totalorder %s27, 0
      %p171 = por %p169, %p170
      %p172 = scmp.ne.s32.totalorder %s161, %s164
      %p173 = scmp.eq.s32.totalorder %s32, 1
      %p174 = por %p172, %p173
      %p175 = scmp.ne.s32.totalorder %s164, %s165
      %p176 = scmp.eq.s32.totalorder %s32, 0
      %p177 = por %p175, %p176
      %p178 = scmp.ne.s32.totalorder %s164, %s165
      %p179 = scmp.eq.s32.totalorder %s33, 1
      %p180 = por %p178, %p179
      %p182 = scmp.ne.s32.totalorder %s165, %s181
      %p183 = scmp.eq.s32.totalorder %s33, 0
      %p184 = por %p182, %p183
      %s185 = ssub.s32 %s34, %s46
      %s186 = ssub.s32 %s35, %s42
      %s187 = sor.u32 %s185, %s186
      %p188 = scmp.eq.s32.totalorder %s187, 0
      %s190 = sadd.s32 %s189, 1
      %s191 = scalar_select %p188, %s189, %s190
      %p194 = pneg %p188
      %p195 = scmp.eq.s32.totalorder %s27, 1
      %p196 = por %p194, %p195
      %p197 = scmp.ne.s32.totalorder %s189, %s192
      %p198 = scmp.eq.s32.totalorder %s27, 0
      %p199 = por %p197, %p198
      %p200 = scmp.ne.s32.totalorder %s189, %s192
      %p201 = scmp.eq.s32.totalorder %s32, 1
      %p202 = por %p200, %p201
      %p203 = scmp.ne.s32.totalorder %s192, %s193
      %p204 = scmp.eq.s32.totalorder %s32, 0
      %p205 = por %p203, %p204
      %p206 = scmp.ne.s32.totalorder %s192, %s193
      %p207 = scmp.eq.s32.totalorder %s33, 1
      %p208 = por %p206, %p207
      %p210 = scmp.ne.s32.totalorder %s193, %s209
      %p211 = scmp.eq.s32.totalorder %s33, 0
      %p212 = por %p210, %p211
      %p213 = scmp.le.s32.totalorder 1, %s27
      %p214 = scmp.lt.s32.totalorder %s27, 3
      %p215 = pnand %p213, %p214
      %p216 = pneg %p215
      // Predicated region
      $region9: #{tpu_custom_call.1} parent=5 // pred_check
        _
      $region10: #{tpu_custom_call.1} parent=5 // pred_check_branch
        %218 = sbr.rel (%p215) target = $region12
      $region11: #{tpu_custom_call.1} parent=5 // pred_region
        %s219 = ssub.s32 %s27, 1
        // Predicated region
        $region13: #{tpu_custom_call.1} parent=11 // pred_check
          %p220 = pneg %p65
        $region14: #{tpu_custom_call.1} parent=11 // pred_check_branch
          %222 = sbr.rel (%p220) target = $region16
        $region15: #{tpu_custom_call.1} parent=11 // pred_region
          %s224 = ssub.s32 32, 32
          %225 = vsyncadd [#allocation9], %s224
          %s226 = smul.addr %s36, 32
          %s227 = scalar_lea.hbm %s0, %s226
          %s229 = sshll.u32 [#allocation8], 4
          %s230 = int_to_ptr.vmem [resolvable:$true] %s229
          %232 = dma.hbm_to_vmem [thread:$0]  %s227, 32, %s230, [#allocation9]
        $region16: #{tpu_custom_call.1} parent=11 // pred_fallthru
          _
      $region12: #{tpu_custom_call.1} parent=5 // pred_fallthru
        _
      %p233 = scmp.lt.s32.totalorder %s27, 2
      // Predicated region
      $region17: #{tpu_custom_call.1} parent=5 // pred_check
        %p234 = pneg %p233
      $region18: #{tpu_custom_call.1} parent=5 // pred_check_branch
        %236 = sbr.rel (%p234) target = $region20
      $region19: #{tpu_custom_call.1} parent=5 // pred_region
        // Predicated region
        $region21: #{tpu_custom_call.1} parent=19 // pred_check
          %p237 = pneg %p87
        $region22: #{tpu_custom_call.1} parent=19 // pred_check_branch
          %239 = sbr.rel (%p237) target = $region24
        $region23: #{tpu_custom_call.1} parent=19 // pred_region
          %s240 = sand.u32 %s27, 1
          %s241 = scalar_lea.sflag [#allocation12], %s240
          %s242 = sand.u32 %s77, 1
          %s243 = smul.addr %s242, 2
          %s244 = scalar_lea.vmem [#allocation11], %s243
          %s246 = ssub.s32 32, 32
          %247 = vsyncadd %s241, %s246
          %s248 = smul.addr %s34, 2
          %s249 = sadd.s32 %s35, %s248
          %s250 = smul.addr %s249, 32
          %s251 = scalar_lea.hbm %s1, %s250
          %s253 = sshll.u32 %s244, 4
          %s254 = int_to_ptr.vmem [resolvable:$true] %s253
          %256 = dma.hbm_to_vmem [thread:$0]  %s251, 32, %s254, %s241
        $region24: #{tpu_custom_call.1} parent=19 // pred_fallthru
          _
        // Predicated region
        $region25: #{tpu_custom_call.1} parent=19 // pred_check
          %p257 = pneg %p115
        $region26: #{tpu_custom_call.1} parent=19 // pred_check_branch
          %259 = sbr.rel (%p257) target = $region28
        $region27: #{tpu_custom_call.1} parent=19 // pred_region
          %s260 = sand.u32 %s27, 1
          %s261 = scalar_lea.sflag [#allocation12], %s260
          %s262 = sand.u32 %s105, 1
          %s263 = smul.addr %s262, 4
          %s264 = scalar_lea.vmem [#allocation13], %s263
          %s265 = smul.u32 2, %s35
          %s267 = ssub.s32 64, 64
          %268 = vsyncadd %s261, %s267
          %s269 = smul.addr %s34, 4
          %s270 = sadd.s32 %s265, %s269
          %s271 = smul.addr %s270, 32
          %s272 = scalar_lea.hbm %s2, %s271
          %s274 = sshll.u32 %s264, 4
          %s275 = int_to_ptr.vmem [resolvable:$true] %s274
          %277 = dma.hbm_to_vmem [thread:$0]  %s272, 64, %s275, %s261
        $region28: #{tpu_custom_call.1} parent=19 // pred_fallthru
          _
        // Predicated region
        $region29: #{tpu_custom_call.1} parent=19 // pred_check
          %p278 = pneg %p143
        $region30: #{tpu_custom_call.1} parent=19 // pred_check_branch
          %280 = sbr.rel (%p278) target = $region32
        $region31: #{tpu_custom_call.1} parent=19 // pred_region
          %p281 = scmp.lt.s32.totalorder %s34, 0
          %s282 = scalar_select %p281, %s34, 0
          %p283 = scmp.lt.s32.totalorder %s35, 1
          %s284 = scalar_select %p283, %s35, 1
          %s285 = smul.addr %s282, 2
          %s286 = sadd.s32 %s284, %s285
          %s287 = smul.addr %s286, 2
          %s288 = scalar_lea.vmem %s3, %s287
        $region32: #{tpu_custom_call.1} parent=19 // pred_fallthru
          _
      $region20: #{tpu_custom_call.1} parent=5 // pred_fallthru
        _
      %p289 = scmp.le.s32.totalorder 1, %s27
      %p290 = scmp.lt.s32.totalorder %s27, 3
      %p291 = pnand %p289, %p290
      %p292 = pneg %p291
      // Predicated region
      $region33: #{tpu_custom_call.1} parent=5 // pred_check
        _
      $region34: #{tpu_custom_call.1} parent=5 // pred_check_branch
        %294 = sbr.rel (%p291) target = $region36
      $region35: #{tpu_custom_call.1} parent=5 // pred_region
        %s295 = ssub.s32 %s27, 1
        // Predicated region
        $region37: #{tpu_custom_call.1} parent=35 // pred_check
          %p296 = pneg %p65
        $region38: #{tpu_custom_call.1} parent=35 // pred_check_branch
          %298 = sbr.rel (%p296) target = $region40
        $region39: #{tpu_custom_call.1} parent=35 // pred_region
          %299 = dma.done [#allocation9], 32
        $region40: #{tpu_custom_call.1} parent=35 // pred_fallthru
          _
        %s300 = sand.u32 %s32, 1
        %s301 = scalar_lea.sflag [#allocation12], %s300
        %s302 = sand.u32 %s80, 1
        %s303 = smul.addr %s302, 2
        %s304 = scalar_lea.vmem [#allocation11], %s303
        // Predicated region
        $region41: #{tpu_custom_call.1} parent=35 // pred_check
          %p305 = pneg %p93
        $region42: #{tpu_custom_call.1} parent=35 // pred_check_branch
          %307 = sbr.rel (%p305) target = $region44
        $region43: #{tpu_custom_call.1} parent=35 // pred_region
          %308 = dma.done %s301, 32
        $region44: #{tpu_custom_call.1} parent=35 // pred_fallthru
          _
        %s309 = sand.u32 %s32, 1
        %s310 = scalar_lea.sflag [#allocation12], %s309
        %s311 = sand.u32 %s108, 1
        %s312 = smul.addr %s311, 4
        %s313 = scalar_lea.vmem [#allocation13], %s312
        // Predicated region
        $region45: #{tpu_custom_call.1} parent=35 // pred_check
          %p314 = pneg %p121
        $region46: #{tpu_custom_call.1} parent=35 // pred_check_branch
          %316 = sbr.rel (%p314) target = $region48
        $region47: #{tpu_custom_call.1} parent=35 // pred_region
          %317 = dma.done %s310, 64
        $region48: #{tpu_custom_call.1} parent=35 // pred_fallthru
          _
        %p318 = pneg %p65
        %p319 = pneg %p62
        %s320 = sand.u32 %s32, 1
        %s321 = scalar_lea.sflag [#allocation12], %s320
        %s322 = sand.u32 %s80, 1
        %s323 = smul.addr %s322, 2
        %s324 = scalar_lea.vmem [#allocation11], %s323
        %p325 = pneg %p93
        %p326 = pneg %p90
        %s327 = sand.u32 %s32, 1
        %s328 = scalar_lea.sflag [#allocation12], %s327
        %s329 = sand.u32 %s108, 1
        %s330 = smul.addr %s329, 4
        %s331 = scalar_lea.vmem [#allocation13], %s330
        %p332 = pneg %p121
        %p333 = pneg %p118
        %p334 = scmp.lt.s32.totalorder %s36, 0
        %s335 = scalar_select %p334, %s36, 0
        %p336 = scmp.lt.s32.totalorder %s37, 1
        %s337 = scalar_select %p336, %s37, 1
        %s338 = smul.addr %s335, 2
        %s339 = sadd.s32 %s337, %s338
        %s340 = smul.addr %s339, 2
        %s341 = scalar_lea.vmem %s3, %s340
        %p342 = pneg %p149
        %p343 = pneg %p146
        %p344 = pneg %p177
        %p345 = pneg %p174
        %s346 = sand.u32 %s164, 1
        %s347 = scalar_lea.sflag [#allocation10], %s346
        %s348 = sand.u32 %s164, 1
        %s349 = smul.addr %s348, 4
        %s350 = scalar_lea.vmem [#allocation14], %s349
        %p351 = pneg %p205
        %p352 = pneg %p202
        %s353 = sand.u32 %s192, 1
        %s354 = scalar_lea.sflag [#allocation16], %s353
        %s355 = sand.u32 %s192, 1
        %s356 = smul.addr %s355, 2
        %s357 = scalar_lea.vmem [#allocation15], %s356
        %s358 = smul.u32 2, %s37
        %p359 = scmp.lt.s32.totalorder %s36, 0
        %s360 = scalar_select %p359, %s36, 0
        %p361 = scmp.lt.s32.totalorder %s37, 1
        %s362 = scalar_select %p361, %s37, 1
        %s363 = smul.addr %s360, 2
        %s364 = sadd.s32 %s362, %s363
        %s365 = smul.addr %s364, 2
        %s366 = scalar_lea.vmem %s3, %s365
        %s367 = smul.u32 2, %s37
        %p368 = scmp.eq.s32.totalorder %s37, 0
        // Predicated region
        $region49: #{tpu_custom_call.1} parent=35 // pred_check
          %p369 = pneg %p368
        $region50: #{tpu_custom_call.1} parent=35 // pred_check_branch
          %371 = sbr.rel (%p369) target = $region52
        $region51: #{tpu_custom_call.1} parent=35 // pred_region
          $region53: #{tpu_custom_call.1} parent=51
            #allocation17 [shape = 's32[1]{0}', space=sflag, size = 0x4, scoped, tag = 'scoped memory for tpu_custom_call.1']
            // Predicated region
            $region54: #{tpu_custom_call.1} parent=53 // pred_check
              _
            $region55: #{tpu_custom_call.1} parent=53 // pred_check_branch
              %373 = sbr.rel target = $region57
            $region56: #{tpu_custom_call.1} parent=53 // pred_region
              %374 = sst [smem:[#allocation20]] [#allocation19]
              %375 = sst [smem:[#allocation21]] [#allocation18]
            $region57: #{tpu_custom_call.1} parent=53 // pred_fallthru
              _
            %377 = shalt.err (0)
            %s379 = sshll.u32 [#allocation3], 4
            %s380 = int_to_ptr.vmem [resolvable:$true] %s379
            %382 = dma.hbm_to_vmem [thread:$0]  %s4, 256, %s380, [#allocation17]
            %s383 = smul.u32 8, 1
            %s384 = smul.u32 %s383, 2
            %s385 = sshll.u32 %s384, 4
            %386 = dma.done [#allocation17], %s385
          $region58: #{tpu_custom_call.1} parent=51
            #allocation22 [shape = 's32[1]{0}', space=sflag, size = 0x4, scoped, tag = 'scoped memory for tpu_custom_call.1']
            // Predicated region
            $region59: #{tpu_custom_call.1} parent=58 // pred_check
              _
            $region60: #{tpu_custom_call.1} parent=58 // pred_check_branch
              %388 = sbr.rel target = $region62
            $region61: #{tpu_custom_call.1} parent=58 // pred_region
              %389 = sst [smem:[#allocation20]] [#allocation24]
              %390 = sst [smem:[#allocation21]] [#allocation23]
            $region62: #{tpu_custom_call.1} parent=58 // pred_fallthru
              _
            %392 = shalt.err (0)
            %s394 = sshll.u32 [#allocation4], 4
            %s395 = int_to_ptr.vmem [resolvable:$true] %s394
            %397 = dma.hbm_to_vmem [thread:$0]  %s5, 4096, %s395, [#allocation22]
            %s398 = smul.u32 8, 16
            %s399 = smul.u32 %s398, 2
            %s400 = sshll.u32 %s399, 4
            %401 = dma.done [#allocation22], %s400
          $region63: #{tpu_custom_call.1} parent=51
            #allocation25 [shape = 's32[1]{0}', space=sflag, size = 0x4, scoped, tag = 'scoped memory for tpu_custom_call.1']
            // Predicated region
            $region64: #{tpu_custom_call.1} parent=63 // pred_check
              _
            $region65: #{tpu_custom_call.1} parent=63 // pred_check_branch
              %403 = sbr.rel target = $region67
            $region66: #{tpu_custom_call.1} parent=63 // pred_region
              %404 = sst [smem:[#allocation20]] [#allocation27]
              %405 = sst [smem:[#allocation21]] [#allocation26]
            $region67: #{tpu_custom_call.1} parent=63 // pred_fallthru
              _
            %407 = shalt.err (0)
            %s409 = sshll.u32 [#allocation5], 4
            %s410 = int_to_ptr.vmem [resolvable:$true] %s409
            %412 = dma.hbm_to_vmem [thread:$0]  %s6, 8192, %s410, [#allocation25]
            %s413 = smul.u32 8, 32
            %s414 = smul.u32 %s413, 2
            %s415 = sshll.u32 %s414, 4
            %416 = dma.done [#allocation25], %s415
          $region68: #{tpu_custom_call.1} parent=51
            #allocation28 [shape = 's32[1]{0}', space=sflag, size = 0x4, scoped, tag = 'scoped memory for tpu_custom_call.1']
            // Predicated region
            $region69: #{tpu_custom_call.1} parent=68 // pred_check
              _
            $region70: #{tpu_custom_call.1} parent=68 // pred_check_branch
              %418 = sbr.rel target = $region72
            $region71: #{tpu_custom_call.1} parent=68 // pred_region
              %419 = sst [smem:[#allocation20]] [#allocation30]
              %420 = sst [smem:[#allocation21]] [#allocation29]
            $region72: #{tpu_custom_call.1} parent=68 // pred_fallthru
              _
            %422 = shalt.err (0)
            %s424 = sshll.u32 [#allocation6], 4
            %s425 = int_to_ptr.vmem [resolvable:$true] %s424
            %427 = dma.hbm_to_vmem [thread:$0]  %s7, 4096, %s425, [#allocation28]
            %s428 = smul.u32 256, 1
            %s429 = sshll.u32 %s428, 4
            %430 = dma.done [#allocation28], %s429
          $region73: #{tpu_custom_call.1} parent=51
            #allocation31 [shape = 's32[1]{0}', space=sflag, size = 0x4, scoped, tag = 'scoped memory for tpu_custom_call.1']
            // Predicated region
            $region74: #{tpu_custom_call.1} parent=73 // pred_check
              _
            $region75: #{tpu_custom_call.1} parent=73 // pred_check_branch
              %432 = sbr.rel target = $region77
            $region76: #{tpu_custom_call.1} parent=73 // pred_region
              %433 = sst [smem:[#allocation20]] [#allocation33]
              %434 = sst [smem:[#allocation21]] [#allocation32]
            $region77: #{tpu_custom_call.1} parent=73 // pred_fallthru
              _
            %436 = shalt.err (0)
            %s438 = sshll.u32 [#allocation7], 4
            %s439 = int_to_ptr.vmem [resolvable:$true] %s438
            %441 = dma.hbm_to_vmem [thread:$0]  %s8, 2048, %s439, [#allocation31]
            %s442 = smul.u32 128, 1
            %s443 = sshll.u32 %s442, 4
            %444 = dma.done [#allocation31], %s443
          %v445 = vld [vmem:[#allocation8] sm:$0x3]
          %vm446 = vcmask 58368
          %447 = vst.msk [vmem:[#allocation2] sm:$0x3] %vm446, %v445
        $region52: #{tpu_custom_call.1} parent=35 // pred_fallthru
          _
        %v448 = vld [vmem:[#allocation2] sm:$0x3]
        %v449 = vld [vmem:[#allocation3] sm:$0xff]
        %v450 = vld [vmem:[#allocation3 + $0x8] sm:$0xff]
        %v451 = vld [vmem:[%s304] sm:$0x3]
        %v452 = vld [vmem:[#allocation4] sm:$0xff]
        %v453 = vld [vmem:[#allocation4 + $0x8] sm:$0xff]
        %v454 = vld [vmem:[#allocation4 + $0x10] sm:$0xff]
        %v455 = vld [vmem:[#allocation4 + $0x18] sm:$0xff]
        %v456 = vld [vmem:[#allocation4 + $0x20] sm:$0xff]
        %v457 = vld [vmem:[#allocation4 + $0x28] sm:$0xff]
        %v458 = vld [vmem:[#allocation4 + $0x30] sm:$0xff]
        %v459 = vld [vmem:[#allocation4 + $0x38] sm:$0xff]
        %v460 = vld [vmem:[#allocation4 + $0x40] sm:$0xff]
        %v461 = vld [vmem:[#allocation4 + $0x48] sm:$0xff]
        %v462 = vld [vmem:[#allocation4 + $0x50] sm:$0xff]
        %v463 = vld [vmem:[#allocation4 + $0x58] sm:$0xff]
        %v464 = vld [vmem:[#allocation4 + $0x60] sm:$0xff]
        %v465 = vld [vmem:[#allocation4 + $0x68] sm:$0xff]
        %v466 = vld [vmem:[#allocation4 + $0x70] sm:$0xff]
        %v467 = vld [vmem:[#allocation4 + $0x78] sm:$0xff]
        %v468 = vld [vmem:[#allocation4 + $0x80] sm:$0xff]
        %v469 = vld [vmem:[#allocation4 + $0x88] sm:$0xff]
        %v470 = vld [vmem:[#allocation4 + $0x90] sm:$0xff]
        %v471 = vld [vmem:[#allocation4 + $0x98] sm:$0xff]
        %v472 = vld [vmem:[#allocation4 + $0xa0] sm:$0xff]
        %v473 = vld [vmem:[#allocation4 + $0xa8] sm:$0xff]
        %v474 = vld [vmem:[#allocation4 + $0xb0] sm:$0xff]
        %v475 = vld [vmem:[#allocation4 + $0xb8] sm:$0xff]
        %v476 = vld [vmem:[#allocation4 + $0xc0] sm:$0xff]
        %v477 = vld [vmem:[#allocation4 + $0xc8] sm:$0xff]
        %v478 = vld [vmem:[#allocation4 + $0xd0] sm:$0xff]
        %v479 = vld [vmem:[#allocation4 + $0xd8] sm:$0xff]
        %v480 = vld [vmem:[#allocation4 + $0xe0] sm:$0xff]
        %v481 = vld [vmem:[#allocation4 + $0xe8] sm:$0xff]
        %v482 = vld [vmem:[#allocation4 + $0xf0] sm:$0xff]
        %v483 = vld [vmem:[#allocation4 + $0xf8] sm:$0xff]
        %484 = vmatprep.subr.mxu0 %v453
        %485 = vmatpush1.msra.mxu0 %v452
        %486 = vmatprep.subr.mxu0 %v455
        %487 = vmatpush1.msra.mxu0 %v454
        %488 = vmatprep.subr.mxu0 %v457
        %489 = vmatpush1.msra.mxu0 %v456
        %490 = vmatprep.subr.mxu0 %v459
        %491 = vmatpush1.msra.mxu0 %v458
        %492 = vmatprep.subr.mxu0 %v461
        %493 = vmatpush1.msra.mxu0 %v460
        %494 = vmatprep.subr.mxu0 %v463
        %495 = vmatpush1.msra.mxu0 %v462
        %496 = vmatprep.subr.mxu0 %v465
        %497 = vmatpush1.msra.mxu0 %v464
        %498 = vmatprep.subr.mxu0 %v467
        %499 = vmatpush1.msra.mxu0 %v466
        %500 = vmatprep.subr.mxu0 %v469
        %501 = vmatpush1.msra.mxu0 %v468
        %502 = vmatprep.subr.mxu0 %v471
        %503 = vmatpush1.msra.mxu0 %v470
        %504 = vmatprep.subr.mxu0 %v473
        %505 = vmatpush1.msra.mxu0 %v472
        %506 = vmatprep.subr.mxu0 %v475
        %507 = vmatpush1.msra.mxu0 %v474
        %508 = vmatprep.subr.mxu0 %v477
        %509 = vmatpush1.msra.mxu0 %v476
        %510 = vmatprep.subr.mxu0 %v479
        %511 = vmatpush1.msra.mxu0 %v478
        %512 = vmatprep.subr.mxu0 %v481
        %513 = vmatpush1.msra.mxu0 %v480
        %514 = vmatprep.subr.mxu0 %v483
        %515 = vmatpush1.msra.mxu0 %v482
        %516 = vmatprep.subr.mxu0 0.0
        %517 = vmatpush1.msra.mxu0 0.0
        %518 = vmatprep.subr.mxu0 0.0
        %519 = vmatpush1.msra.mxu0 0.0
        %520 = vmatprep.subr.mxu0 0.0
        %521 = vmatpush1.msra.mxu0 0.0
        %522 = vmatprep.subr.mxu0 0.0
        %523 = vmatpush1.msra.mxu0 0.0
        %524 = vmatprep.subr.mxu0 0.0
        %525 = vmatpush1.msra.mxu0 0.0
        %526 = vmatprep.subr.mxu0 0.0
        %527 = vmatpush1.msra.mxu0 0.0
        %528 = vmatprep.subr.mxu0 0.0
        %529 = vmatpush1.msra.mxu0 0.0
        %530 = vmatprep.subr.mxu0 0.0
        %531 = vmatpush1.msra.mxu0 0.0
        %532 = vmatprep.subr.mxu0 0.0
        %533 = vmatpush1.msra.mxu0 0.0
        %534 = vmatprep.subr.mxu0 0.0
        %535 = vmatpush1.msra.mxu0 0.0
        %536 = vmatprep.subr.mxu0 0.0
        %537 = vmatpush1.msra.mxu0 0.0
        %538 = vmatprep.subr.mxu0 0.0
        %539 = vmatpush1.msra.mxu0 0.0
        %540 = vmatprep.subr.mxu0 0.0
        %541 = vmatpush1.msra.mxu0 0.0
        %542 = vmatprep.subr.mxu0 0.0
        %543 = vmatpush1.msra.mxu0 0.0
        %544 = vmatprep.subr.mxu0 0.0
        %545 = vmatpush1.msra.mxu0 0.0
        %546 = vmatprep.subr.mxu0 0.0
        %547 = vmatpush1.msra.mxu0 0.0
        %548 = vmatprep.mubr.f32.mxu0 0.0
        %549 = vmatmul.mubr.f32.gmra.mrb[0].mxu0 %v451
        %v550 = vpop.f32.mrb[0].mxu0
        %v551 = vadd.f32 0.0, %v550
        %v552 = vpop.f32.mrb[0].mxu0
        %v553 = vadd.f32 0.0, %v552
        %554 = vdwg.mxu0
        %vm555 = vcmask 64512
        %v557 = vsel %vm555, %v448, 0
        %559 = vmatprep.subr.mxu0 %v450
        %560 = vmatpush1.msra.mxu0 %v449
        %561 = vmatprep.subr.mxu0 0.0
        %562 = vmatpush1.msra.mxu0 0.0
        %563 = vmatprep.subr.mxu0 0.0
        %564 = vmatpush1.msra.mxu0 0.0
        %565 = vmatprep.subr.mxu0 0.0
        %566 = vmatpush1.msra.mxu0 0.0
        %567 = vmatprep.subr.mxu0 0.0
        %568 = vmatpush1.msra.mxu0 0.0
        %569 = vmatprep.subr.mxu0 0.0
        %570 = vmatpush1.msra.mxu0 0.0
        %571 = vmatprep.subr.mxu0 0.0
        %572 = vmatpush1.msra.mxu0 0.0
        %573 = vmatprep.subr.mxu0 0.0
        %574 = vmatpush1.msra.mxu0 0.0
        %575 = vmatprep.subr.mxu0 0.0
        %576 = vmatpush1.msra.mxu0 0.0
        %577 = vmatprep.subr.mxu0 0.0
        %578 = vmatpush1.msra.mxu0 0.0
        %579 = vmatprep.subr.mxu0 0.0
        %580 = vmatpush1.msra.mxu0 0.0
        %581 = vmatprep.subr.mxu0 0.0
        %582 = vmatpush1.msra.mxu0 0.0
        %583 = vmatprep.subr.mxu0 0.0
        %584 = vmatpush1.msra.mxu0 0.0
        %585 = vmatprep.subr.mxu0 0.0
        %586 = vmatpush1.msra.mxu0 0.0
        %587 = vmatprep.subr.mxu0 0.0
        %588 = vmatpush1.msra.mxu0 0.0
        %589 = vmatprep.subr.mxu0 0.0
        %590 = vmatpush1.msra.mxu0 0.0
        %591 = vmatprep.subr.mxu0 0.0
        %592 = vmatpush1.msra.mxu0 0.0
        %593 = vmatprep.subr.mxu0 0.0
        %594 = vmatpush1.msra.mxu0 0.0
        %595 = vmatprep.subr.mxu0 0.0
        %596 = vmatpush1.msra.mxu0 0.0
        %597 = vmatprep.subr.mxu0 0.0
        %598 = vmatpush1.msra.mxu0 0.0
        %599 = vmatprep.subr.mxu0 0.0
        %600 = vmatpush1.msra.mxu0 0.0
        %601 = vmatprep.subr.mxu0 0.0
        %602 = vmatpush1.msra.mxu0 0.0
        %603 = vmatprep.subr.mxu0 0.0
        %604 = vmatpush1.msra.mxu0 0.0
        %605 = vmatprep.subr.mxu0 0.0
        %606 = vmatpush1.msra.mxu0 0.0
        %607 = vmatprep.subr.mxu0 0.0
        %608 = vmatpush1.msra.mxu0 0.0
        %609 = vmatprep.subr.mxu0 0.0
        %610 = vmatpush1.msra.mxu0 0.0
        %611 = vmatprep.subr.mxu0 0.0
        %612 = vmatpush1.msra.mxu0 0.0
        %613 = vmatprep.subr.mxu0 0.0
        %614 = vmatpush1.msra.mxu0 0.0
        %615 = vmatprep.subr.mxu0 0.0
        %616 = vmatpush1.msra.mxu0 0.0
        %617 = vmatprep.subr.mxu0 0.0
        %618 = vmatpush1.msra.mxu0 0.0
        %619 = vmatprep.subr.mxu0 0.0
        %620 = vmatpush1.msra.mxu0 0.0
        %621 = vmatprep.subr.mxu0 0.0
        %622 = vmatpush1.msra.mxu0 0.0
        %623 = vmatprep.mubr.f32.mxu0 0.0
        %624 = vmatmul.mubr.f32.gmra.mrb[0].mxu0 %v557
        %v625 = vpop.f32.mrb[0].mxu0
        %v626 = vadd.f32 %v551, %v625
        %v627 = vpop.f32.mrb[0].mxu0
        %v628 = vadd.f32 %v553, %v627
        %629 = vdwg.mxu0
        %v630 = vld [vmem:[%s313] sm:$0xf]
        %v631 = vld [vmem:[#allocation5] sm:$0xff]
        %v632 = vld [vmem:[#allocation5 + $0x8] sm:$0xff]
        %v633 = vld [vmem:[#allocation5 + $0x10] sm:$0xff]
        %v634 = vld [vmem:[#allocation5 + $0x18] sm:$0xff]
        %v635 = vld [vmem:[#allocation5 + $0x20] sm:$0xff]
        %v636 = vld [vmem:[#allocation5 + $0x28] sm:$0xff]
        %v637 = vld [vmem:[#allocation5 + $0x30] sm:$0xff]
        %v638 = vld [vmem:[#allocation5 + $0x38] sm:$0xff]
        %v639 = vld [vmem:[#allocation5 + $0x40] sm:$0xff]
        %v640 = vld [vmem:[#allocation5 + $0x48] sm:$0xff]
        %v641 = vld [vmem:[#allocation5 + $0x50] sm:$0xff]
        %v642 = vld [vmem:[#allocation5 + $0x58] sm:$0xff]
        %v643 = vld [vmem:[#allocation5 + $0x60] sm:$0xff]
        %v644 = vld [vmem:[#allocation5 + $0x68] sm:$0xff]
        %v645 = vld [vmem:[#allocation5 + $0x70] sm:$0xff]
        %v646 = vld [vmem:[#allocation5 + $0x78] sm:$0xff]
        %v647 = vld [vmem:[#allocation5 + $0x80] sm:$0xff]
        %v648 = vld [vmem:[#allocation5 + $0x88] sm:$0xff]
        %v649 = vld [vmem:[#allocation5 + $0x90] sm:$0xff]
        %v650 = vld [vmem:[#allocation5 + $0x98] sm:$0xff]
        %v651 = vld [vmem:[#allocation5 + $0xa0] sm:$0xff]
        %v652 = vld [vmem:[#allocation5 + $0xa8] sm:$0xff]
        %v653 = vld [vmem:[#allocation5 + $0xb0] sm:$0xff]
        %v654 = vld [vmem:[#allocation5 + $0xb8] sm:$0xff]
        %v655 = vld [vmem:[#allocation5 + $0xc0] sm:$0xff]
        %v656 = vld [vmem:[#allocation5 + $0xc8] sm:$0xff]
        %v657 = vld [vmem:[#allocation5 + $0xd0] sm:$0xff]
        %v658 = vld [vmem:[#allocation5 + $0xd8] sm:$0xff]
        %v659 = vld [vmem:[#allocation5 + $0xe0] sm:$0xff]
        %v660 = vld [vmem:[#allocation5 + $0xe8] sm:$0xff]
        %v661 = vld [vmem:[#allocation5 + $0xf0] sm:$0xff]
        %v662 = vld [vmem:[#allocation5 + $0xf8] sm:$0xff]
        %v663 = vld [vmem:[#allocation5 + $0x100] sm:$0xff]
        %v664 = vld [vmem:[#allocation5 + $0x108] sm:$0xff]
        %v665 = vld [vmem:[#allocation5 + $0x110] sm:$0xff]
        %v666 = vld [vmem:[#allocation5 + $0x118] sm:$0xff]
        %v667 = vld [vmem:[#allocation5 + $0x120] sm:$0xff]
        %v668 = vld [vmem:[#allocation5 + $0x128] sm:$0xff]
        %v669 = vld [vmem:[#allocation5 + $0x130] sm:$0xff]
        %v670 = vld [vmem:[#allocation5 + $0x138] sm:$0xff]
        %v671 = vld [vmem:[#allocation5 + $0x140] sm:$0xff]
        %v672 = vld [vmem:[#allocation5 + $0x148] sm:$0xff]
        %v673 = vld [vmem:[#allocation5 + $0x150] sm:$0xff]
        %v674 = vld [vmem:[#allocation5 + $0x158] sm:$0xff]
        %v675 = vld [vmem:[#allocation5 + $0x160] sm:$0xff]
        %v676 = vld [vmem:[#allocation5 + $0x168] sm:$0xff]
        %v677 = vld [vmem:[#allocation5 + $0x170] sm:$0xff]
        %v678 = vld [vmem:[#allocation5 + $0x178] sm:$0xff]
        %v679 = vld [vmem:[#allocation5 + $0x180] sm:$0xff]
        %v680 = vld [vmem:[#allocation5 + $0x188] sm:$0xff]
        %v681 = vld [vmem:[#allocation5 + $0x190] sm:$0xff]
        %v682 = vld [vmem:[#allocation5 + $0x198] sm:$0xff]
        %v683 = vld [vmem:[#allocation5 + $0x1a0] sm:$0xff]
        %v684 = vld [vmem:[#allocation5 + $0x1a8] sm:$0xff]
        %v685 = vld [vmem:[#allocation5 + $0x1b0] sm:$0xff]
        %v686 = vld [vmem:[#allocation5 + $0x1b8] sm:$0xff]
        %v687 = vld [vmem:[#allocation5 + $0x1c0] sm:$0xff]
        %v688 = vld [vmem:[#allocation5 + $0x1c8] sm:$0xff]
        %v689 = vld [vmem:[#allocation5 + $0x1d0] sm:$0xff]
        %v690 = vld [vmem:[#allocation5 + $0x1d8] sm:$0xff]
        %v691 = vld [vmem:[#allocation5 + $0x1e0] sm:$0xff]
        %v692 = vld [vmem:[#allocation5 + $0x1e8] sm:$0xff]
        %v693 = vld [vmem:[#allocation5 + $0x1f0] sm:$0xff]
        %v694 = vld [vmem:[#allocation5 + $0x1f8] sm:$0xff]
        %v697 = vunpack.c.l.s4 1983009808
        %v698 = vunpack.c.0.s8 %v697
        %v699 = vlaneseq
        %v700 = vshrl.u32 %v699, 7
        %v701 = vsub.s32 %v698, %v700
        %v702 = vrot.slane %v630, %v701
        %v703 = vcombine.high %v702, %v702
        %706 = vmatprep.subr.mxu0 %v632
        %707 = vmatpush1.msra.mxu0 %v631
        %708 = vmatprep.subr.mxu0 %v634
        %709 = vmatpush1.msra.mxu0 %v633
        %710 = vmatprep.subr.mxu0 %v636
        %711 = vmatpush1.msra.mxu0 %v635
        %712 = vmatprep.subr.mxu0 %v638
        %713 = vmatpush1.msra.mxu0 %v637
        %714 = vmatprep.subr.mxu0 %v640
        %715 = vmatpush1.msra.mxu0 %v639
        %716 = vmatprep.subr.mxu0 %v642
        %717 = vmatpush1.msra.mxu0 %v641
        %718 = vmatprep.subr.mxu0 %v644
        %719 = vmatpush1.msra.mxu0 %v643
        %720 = vmatprep.subr.mxu0 %v646
        %721 = vmatpush1.msra.mxu0 %v645
        %722 = vmatprep.subr.mxu0 %v648
        %723 = vmatpush1.msra.mxu0 %v647
        %724 = vmatprep.subr.mxu0 %v650
        %725 = vmatpush1.msra.mxu0 %v649
        %726 = vmatprep.subr.mxu0 %v652
        %727 = vmatpush1.msra.mxu0 %v651
        %728 = vmatprep.subr.mxu0 %v654
        %729 = vmatpush1.msra.mxu0 %v653
        %730 = vmatprep.subr.mxu0 %v656
        %731 = vmatpush1.msra.mxu0 %v655
        %732 = vmatprep.subr.mxu0 %v658
        %733 = vmatpush1.msra.mxu0 %v657
        %734 = vmatprep.subr.mxu0 %v660
        %735 = vmatpush1.msra.mxu0 %v659
        %736 = vmatprep.subr.mxu0 %v662
        %737 = vmatpush1.msra.mxu0 %v661
        %738 = vmatprep.subr.mxu0 %v664
        %739 = vmatpush1.msra.mxu0 %v663
        %740 = vmatprep.subr.mxu0 %v666
        %741 = vmatpush1.msra.mxu0 %v665
        %742 = vmatprep.subr.mxu0 %v668
        %743 = vmatpush1.msra.mxu0 %v667
        %744 = vmatprep.subr.mxu0 %v670
        %745 = vmatpush1.msra.mxu0 %v669
        %746 = vmatprep.subr.mxu0 %v672
        %747 = vmatpush1.msra.mxu0 %v671
        %748 = vmatprep.subr.mxu0 %v674
        %749 = vmatpush1.msra.mxu0 %v673
        %750 = vmatprep.subr.mxu0 %v676
        %751 = vmatpush1.msra.mxu0 %v675
        %752 = vmatprep.subr.mxu0 %v678
        %753 = vmatpush1.msra.mxu0 %v677
        %754 = vmatprep.subr.mxu0 %v680
        %755 = vmatpush1.msra.mxu0 %v679
        %756 = vmatprep.subr.mxu0 %v682
        %757 = vmatpush1.msra.mxu0 %v681
        %758 = vmatprep.subr.mxu0 %v684
        %759 = vmatpush1.msra.mxu0 %v683
        %760 = vmatprep.subr.mxu0 %v686
        %761 = vmatpush1.msra.mxu0 %v685
        %762 = vmatprep.subr.mxu0 %v688
        %763 = vmatpush1.msra.mxu0 %v687
        %764 = vmatprep.subr.mxu0 %v690
        %765 = vmatpush1.msra.mxu0 %v689
        %766 = vmatprep.subr.mxu0 %v692
        %767 = vmatpush1.msra.mxu0 %v691
        %768 = vmatprep.subr.mxu0 %v694
        %769 = vmatpush1.msra.mxu0 %v693
        %770 = vmatprep.mubr.f32.mxu0 %v703
        %771 = vmatmul.mubr.f32.gmra.mrb[0].mxu0 %v702
        %v772 = vpop.f32.mrb[0].mxu0
        %v773 = vadd.f32 0.0, %v772
        %v774 = vpop.f32.mrb[0].mxu0
        %v775 = vadd.f32 0.0, %v774
        %776 = vdwg.mxu0
        %v777 = vadd.f32 %v626, %v773
        %v778 = vadd.f32 %v628, %v775
        %v781 = vcombine.low %v777, %v778
        %v783 = vunpack.c.l.s4 1983009808
        %v784 = vunpack.c.0.s8 %v783
        %v785 = vlaneseq
        %v786 = vshrl.u32 %v785, 7
        %v787 = vsub.s32 %v784, %v786
        %v788 = vrot.slane %v781, %v787
        %790 = vst [vmem:[%s350] sm:$0xf] %v788
        %791 = vrot.lane.b32.xlu0 %v778, 8
        %v792 = vpop.permute.xlu0 %791
        %vm794 = vcmask 58368
        %795 = vst.msk [vmem:[#allocation2] sm:$0x3] %vm794, %v792
        %v796 = vld [vmem:[#allocation6] sm:$0xff]
        %v797 = vld [vmem:[#allocation6 + $0x8] sm:$0xff]
        %v798 = vld [vmem:[#allocation6 + $0x10] sm:$0xff]
        %v799 = vld [vmem:[#allocation6 + $0x18] sm:$0xff]
        %v800 = vld [vmem:[#allocation6 + $0x20] sm:$0xff]
        %v801 = vld [vmem:[#allocation6 + $0x28] sm:$0xff]
        %v802 = vld [vmem:[#allocation6 + $0x30] sm:$0xff]
        %v803 = vld [vmem:[#allocation6 + $0x38] sm:$0xff]
        %v804 = vld [vmem:[#allocation6 + $0x40] sm:$0xff]
        %v805 = vld [vmem:[#allocation6 + $0x48] sm:$0xff]
        %v806 = vld [vmem:[#allocation6 + $0x50] sm:$0xff]
        %v807 = vld [vmem:[#allocation6 + $0x58] sm:$0xff]
        %v808 = vld [vmem:[#allocation6 + $0x60] sm:$0xff]
        %v809 = vld [vmem:[#allocation6 + $0x68] sm:$0xff]
        %v810 = vld [vmem:[#allocation6 + $0x70] sm:$0xff]
        %v811 = vld [vmem:[#allocation6 + $0x78] sm:$0xff]
        %v812 = vld [vmem:[#allocation6 + $0x80] sm:$0xff]
        %v813 = vld [vmem:[#allocation6 + $0x88] sm:$0xff]
        %v814 = vld [vmem:[#allocation6 + $0x90] sm:$0xff]
        %v815 = vld [vmem:[#allocation6 + $0x98] sm:$0xff]
        %v816 = vld [vmem:[#allocation6 + $0xa0] sm:$0xff]
        %v817 = vld [vmem:[#allocation6 + $0xa8] sm:$0xff]
        %v818 = vld [vmem:[#allocation6 + $0xb0] sm:$0xff]
        %v819 = vld [vmem:[#allocation6 + $0xb8] sm:$0xff]
        %v820 = vld [vmem:[#allocation6 + $0xc0] sm:$0xff]
        %v821 = vld [vmem:[#allocation6 + $0xc8] sm:$0xff]
        %v822 = vld [vmem:[#allocation6 + $0xd0] sm:$0xff]
        %v823 = vld [vmem:[#allocation6 + $0xd8] sm:$0xff]
        %v824 = vld [vmem:[#allocation6 + $0xe0] sm:$0xff]
        %v825 = vld [vmem:[#allocation6 + $0xe8] sm:$0xff]
        %v826 = vld [vmem:[#allocation6 + $0xf0] sm:$0xff]
        %v827 = vld [vmem:[#allocation6 + $0xf8] sm:$0xff]
        %v828 = vld [vmem:[%s366] sm:$0x3]
        %v829 = vld [vmem:[#allocation7] sm:$0xff]
        %v830 = vld [vmem:[#allocation7 + $0x8] sm:$0xff]
        %v831 = vld [vmem:[#allocation7 + $0x10] sm:$0xff]
        %v832 = vld [vmem:[#allocation7 + $0x18] sm:$0xff]
        %v833 = vld [vmem:[#allocation7 + $0x20] sm:$0xff]
        %v834 = vld [vmem:[#allocation7 + $0x28] sm:$0xff]
        %v835 = vld [vmem:[#allocation7 + $0x30] sm:$0xff]
        %v836 = vld [vmem:[#allocation7 + $0x38] sm:$0xff]
        %v837 = vld [vmem:[#allocation7 + $0x40] sm:$0xff]
        %v838 = vld [vmem:[#allocation7 + $0x48] sm:$0xff]
        %v839 = vld [vmem:[#allocation7 + $0x50] sm:$0xff]
        %v840 = vld [vmem:[#allocation7 + $0x58] sm:$0xff]
        %v841 = vld [vmem:[#allocation7 + $0x60] sm:$0xff]
        %v842 = vld [vmem:[#allocation7 + $0x68] sm:$0xff]
        %v843 = vld [vmem:[#allocation7 + $0x70] sm:$0xff]
        %v844 = vld [vmem:[#allocation7 + $0x78] sm:$0xff]
        %845 = vmatprep.subr.mxu0 0.0
        %846 = vmatpush1.msra.mxu0 %v829
        %847 = vmatprep.subr.mxu0 0.0
        %848 = vmatpush1.msra.mxu0 %v830
        %849 = vmatprep.subr.mxu0 0.0
        %850 = vmatpush1.msra.mxu0 %v831
        %851 = vmatprep.subr.mxu0 0.0
        %852 = vmatpush1.msra.mxu0 %v832
        %853 = vmatprep.subr.mxu0 0.0
        %854 = vmatpush1.msra.mxu0 %v833
        %855 = vmatprep.subr.mxu0 0.0
        %856 = vmatpush1.msra.mxu0 %v834
        %857 = vmatprep.subr.mxu0 0.0
        %858 = vmatpush1.msra.mxu0 %v835
        %859 = vmatprep.subr.mxu0 0.0
        %860 = vmatpush1.msra.mxu0 %v836
        %861 = vmatprep.subr.mxu0 0.0
        %862 = vmatpush1.msra.mxu0 %v837
        %863 = vmatprep.subr.mxu0 0.0
        %864 = vmatpush1.msra.mxu0 %v838
        %865 = vmatprep.subr.mxu0 0.0
        %866 = vmatpush1.msra.mxu0 %v839
        %867 = vmatprep.subr.mxu0 0.0
        %868 = vmatpush1.msra.mxu0 %v840
        %869 = vmatprep.subr.mxu0 0.0
        %870 = vmatpush1.msra.mxu0 %v841
        %871 = vmatprep.subr.mxu0 0.0
        %872 = vmatpush1.msra.mxu0 %v842
        %873 = vmatprep.subr.mxu0 0.0
        %874 = vmatpush1.msra.mxu0 %v843
        %875 = vmatprep.subr.mxu0 0.0
        %876 = vmatpush1.msra.mxu0 %v844
        %877 = vmatprep.subr.mxu0 0.0
        %878 = vmatpush1.msra.mxu0 0.0
        %879 = vmatprep.subr.mxu0 0.0
        %880 = vmatpush1.msra.mxu0 0.0
        %881 = vmatprep.subr.mxu0 0.0
        %882 = vmatpush1.msra.mxu0 0.0
        %883 = vmatprep.subr.mxu0 0.0
        %884 = vmatpush1.msra.mxu0 0.0
        %885 = vmatprep.subr.mxu0 0.0
        %886 = vmatpush1.msra.mxu0 0.0
        %887 = vmatprep.subr.mxu0 0.0
        %888 = vmatpush1.msra.mxu0 0.0
        %889 = vmatprep.subr.mxu0 0.0
        %890 = vmatpush1.msra.mxu0 0.0
        %891 = vmatprep.subr.mxu0 0.0
        %892 = vmatpush1.msra.mxu0 0.0
        %893 = vmatprep.subr.mxu0 0.0
        %894 = vmatpush1.msra.mxu0 0.0
        %895 = vmatprep.subr.mxu0 0.0
        %896 = vmatpush1.msra.mxu0 0.0
        %897 = vmatprep.subr.mxu0 0.0
        %898 = vmatpush1.msra.mxu0 0.0
        %899 = vmatprep.subr.mxu0 0.0
        %900 = vmatpush1.msra.mxu0 0.0
        %901 = vmatprep.subr.mxu0 0.0
        %902 = vmatpush1.msra.mxu0 0.0
        %903 = vmatprep.subr.mxu0 0.0
        %904 = vmatpush1.msra.mxu0 0.0
        %905 = vmatprep.subr.mxu0 0.0
        %906 = vmatpush1.msra.mxu0 0.0
        %907 = vmatprep.subr.mxu0 0.0
        %908 = vmatpush1.msra.mxu0 0.0
        %909 = vmatprep.mubr.f32.mxu0 0.0
        %910 = vmatmul.mubr.f32.gmra.mrb[0].mxu0 %v828
        %v911 = vpop.f32.mrb[0].mxu0
        %v912 = vadd.f32 0.0, %v911
        %v913 = vpop.f32.mrb[0].mxu0
        %914 = vdwg.mxu0
        %915 = vmatprep.subr.mxu0 0.0
        %916 = vmatpush1.msra.mxu0 %v796
        %917 = vmatprep.subr.mxu0 0.0
        %918 = vmatpush1.msra.mxu0 %v797
        %919 = vmatprep.subr.mxu0 0.0
        %920 = vmatpush1.msra.mxu0 %v798
        %921 = vmatprep.subr.mxu0 0.0
        %922 = vmatpush1.msra.mxu0 %v799
        %923 = vmatprep.subr.mxu0 0.0
        %924 = vmatpush1.msra.mxu0 %v800
        %925 = vmatprep.subr.mxu0 0.0
        %926 = vmatpush1.msra.mxu0 %v801
        %927 = vmatprep.subr.mxu0 0.0
        %928 = vmatpush1.msra.mxu0 %v802
        %929 = vmatprep.subr.mxu0 0.0
        %930 = vmatpush1.msra.mxu0 %v803
        %931 = vmatprep.subr.mxu0 0.0
        %932 = vmatpush1.msra.mxu0 %v804
        %933 = vmatprep.subr.mxu0 0.0
        %934 = vmatpush1.msra.mxu0 %v805
        %935 = vmatprep.subr.mxu0 0.0
        %936 = vmatpush1.msra.mxu0 %v806
        %937 = vmatprep.subr.mxu0 0.0
        %938 = vmatpush1.msra.mxu0 %v807
        %939 = vmatprep.subr.mxu0 0.0
        %940 = vmatpush1.msra.mxu0 %v808
        %941 = vmatprep.subr.mxu0 0.0
        %942 = vmatpush1.msra.mxu0 %v809
        %943 = vmatprep.subr.mxu0 0.0
        %944 = vmatpush1.msra.mxu0 %v810
        %945 = vmatprep.subr.mxu0 0.0
        %946 = vmatpush1.msra.mxu0 %v811
        %947 = vmatprep.subr.mxu0 0.0
        %948 = vmatpush1.msra.mxu0 %v812
        %949 = vmatprep.subr.mxu0 0.0
        %950 = vmatpush1.msra.mxu0 %v813
        %951 = vmatprep.subr.mxu0 0.0
        %952 = vmatpush1.msra.mxu0 %v814
        %953 = vmatprep.subr.mxu0 0.0
        %954 = vmatpush1.msra.mxu0 %v815
        %955 = vmatprep.subr.mxu0 0.0
        %956 = vmatpush1.msra.mxu0 %v816
        %957 = vmatprep.subr.mxu0 0.0
        %958 = vmatpush1.msra.mxu0 %v817
        %959 = vmatprep.subr.mxu0 0.0
        %960 = vmatpush1.msra.mxu0 %v818
        %961 = vmatprep.subr.mxu0 0.0
        %962 = vmatpush1.msra.mxu0 %v819
        %963 = vmatprep.subr.mxu0 0.0
        %964 = vmatpush1.msra.mxu0 %v820
        %965 = vmatprep.subr.mxu0 0.0
        %966 = vmatpush1.msra.mxu0 %v821
        %967 = vmatprep.subr.mxu0 0.0
        %968 = vmatpush1.msra.mxu0 %v822
        %969 = vmatprep.subr.mxu0 0.0
        %970 = vmatpush1.msra.mxu0 %v823
        %971 = vmatprep.subr.mxu0 0.0
        %972 = vmatpush1.msra.mxu0 %v824
        %973 = vmatprep.subr.mxu0 0.0
        %974 = vmatpush1.msra.mxu0 %v825
        %975 = vmatprep.subr.mxu0 0.0
        %976 = vmatpush1.msra.mxu0 %v826
        %977 = vmatprep.subr.mxu0 0.0
        %978 = vmatpush1.msra.mxu0 %v827
        %979 = vmatprep.mubr.f32.mxu0 %v778
        %980 = vmatmul.mubr.f32.gmra.mrb[0].mxu0 %v777
        %v981 = vpop.f32.mrb[0].mxu0
        %v982 = vadd.f32 %v912, %v981
        %v983 = vpop.f32.mrb[0].mxu0
        %984 = vdwg.mxu0
        %985 = vst [vmem:[%s357] sm:$0x3] %v982
        %s986 = sand.u32 %s164, 1
        %s987 = scalar_lea.sflag [#allocation10], %s986
        %s988 = sand.u32 %s164, 1
        %s989 = smul.addr %s988, 4
        %s990 = scalar_lea.vmem [#allocation14], %s989
        %s991 = sand.u32 %s192, 1
        %s992 = scalar_lea.sflag [#allocation16], %s991
        %s993 = sand.u32 %s192, 1
        %s994 = smul.addr %s993, 2
        %s995 = scalar_lea.vmem [#allocation15], %s994
        // Predicated region
        $region78: #{tpu_custom_call.1} parent=35 // pred_check
          %p996 = pneg %p174
        $region79: #{tpu_custom_call.1} parent=35 // pred_check_branch
          %998 = sbr.rel (%p996) target = $region81
        $region80: #{tpu_custom_call.1} parent=35 // pred_region
          %s999 = smul.u32 2, %s37
          %s1001 = ssub.s32 64, 64
          %1002 = vsyncadd %s987, %s1001
          %s1003 = smul.addr %s36, 4
          %s1004 = sadd.s32 %s999, %s1003
          %s1005 = smul.addr %s1004, 32
          %s1006 = scalar_lea.hbm %s9, %s1005
          %s1008 = sshll.u32 %s990, 4
          %s1009 = int_to_ptr.vmem [resolvable:$true] %s1008
          %1011 = dma.vmem_to_hbm [thread:$0]  %s1009, 64, %s1006, %s987
        $region81: #{tpu_custom_call.1} parent=35 // pred_fallthru
          _
        // Predicated region
        $region82: #{tpu_custom_call.1} parent=35 // pred_check
          %p1012 = pneg %p202
        $region83: #{tpu_custom_call.1} parent=35 // pred_check_branch
          %1014 = sbr.rel (%p1012) target = $region85
        $region84: #{tpu_custom_call.1} parent=35 // pred_region
          %s1016 = ssub.s32 32, 32
          %1017 = vsyncadd %s992, %s1016
          %s1018 = smul.addr %s36, 2
          %s1019 = sadd.s32 %s37, %s1018
          %s1020 = smul.addr %s1019, 32
          %s1021 = scalar_lea.hbm %s10, %s1020
          %s1023 = sshll.u32 %s995, 4
          %s1024 = int_to_ptr.vmem [resolvable:$true] %s1023
          %1026 = dma.vmem_to_hbm [thread:$0]  %s1024, 32, %s1021, %s992
        $region85: #{tpu_custom_call.1} parent=35 // pred_fallthru
          _
      $region36: #{tpu_custom_call.1} parent=5 // pred_fallthru
        _
      %p1027 = scmp.le.s32.totalorder 2, %s27
      // Predicated region
      $region86: #{tpu_custom_call.1} parent=5 // pred_check
        %p1028 = pneg %p1027
      $region87: #{tpu_custom_call.1} parent=5 // pred_check_branch
        %1030 = sbr.rel (%p1028) target = $region89
      $region88: #{tpu_custom_call.1} parent=5 // pred_region
        %s1031 = ssub.s32 %s27, 2
        // Predicated region
        $region90: #{tpu_custom_call.1} parent=88 // pred_check
          %p1032 = pneg %p180
        $region91: #{tpu_custom_call.1} parent=88 // pred_check_branch
          %1034 = sbr.rel (%p1032) target = $region93
        $region92: #{tpu_custom_call.1} parent=88 // pred_region
          %s1035 = sand.u32 %s165, 1
          %s1036 = scalar_lea.sflag [#allocation10], %s1035
          %s1037 = sand.u32 %s165, 1
          %s1038 = smul.addr %s1037, 4
          %s1039 = scalar_lea.vmem [#allocation14], %s1038
          %1040 = dma.done %s1036, 64
        $region93: #{tpu_custom_call.1} parent=88 // pred_fallthru
          _
        // Predicated region
        $region94: #{tpu_custom_call.1} parent=88 // pred_check
          %p1041 = pneg %p208
        $region95: #{tpu_custom_call.1} parent=88 // pred_check_branch
          %1043 = sbr.rel (%p1041) target = $region97
        $region96: #{tpu_custom_call.1} parent=88 // pred_region
          %s1044 = sand.u32 %s193, 1
          %s1045 = scalar_lea.sflag [#allocation16], %s1044
          %s1046 = sand.u32 %s193, 1
          %s1047 = smul.addr %s1046, 2
          %s1048 = scalar_lea.vmem [#allocation15], %s1047
          %1049 = dma.done %s1045, 32
        $region97: #{tpu_custom_call.1} parent=88 // pred_fallthru
          _
      $region89: #{tpu_custom_call.1} parent=5 // pred_fallthru
        _
    $region6: #{tpu_custom_call.1} parent=1 // loop_footer
      %s31 = sadd.s32 1, %s27
    $region7: #{tpu_custom_call.1} parent=1 // loop_footer_branch
      %26 = sbr.rel target = $region3
    $region8: #{tpu_custom_call.1} parent=1 // loop_exit
      _
    %1050 = vsyncpa [#allocation9], 1
    %s1051 = scalar_lea.sflag [#allocation9], 1
    %1052 = vsyncpa %s1051, 1
    %1053 = vsyncpa [#allocation12], 1
    %s1054 = scalar_lea.sflag [#allocation12], 1
    %1055 = vsyncpa %s1054, 1
    %1056 = vsyncpa [#allocation10], 1
    %s1057 = scalar_lea.sflag [#allocation10], 1
    %1058 = vsyncpa %s1057, 1
    %1059 = vsyncpa [#allocation16], 1
    %s1060 = scalar_lea.sflag [#allocation16], 1
    %1061 = vsyncpa %s1060, 1

</llo_original>
